<compile_context>
chip_gen: v7x
topology: tpu7x:2x2x1
jax: 0.10.0
libtpu: 0.0.40
codegen_flags: <defaults>
</compile_context>

<pallas_src>
import functools

import jax
import jax.numpy as jnp
from jax import lax
from jax.experimental import pallas as pl
from jax.experimental.pallas import tpu as pltpu


# ---------------------------------------------------------------------------
# Fused Pallas kernel: QKV projection + RPE attention + output projection.
# Grid = (B, num_q_tiles); one batch element x one query tile per step.
# ---------------------------------------------------------------------------
def mha_fused_kernel(x_ref, wq_ref, wk_ref, wv_ref, bias_ref, wp_ref, bp_ref,
                     o_ref, q_scr, k_scr, v_scr, y_scr,
                     *, num_heads, head_size, q_tile):
    H, hs = num_heads, head_size
    cd = wq_ref.dtype                     # MXU operand dtype (bf16)
    T = k_scr.shape[0]
    tq = q_tile
    qi = pl.program_id(1)

    # --- K/V projection once per batch element (first Q tile only). Results live
    #     in lane-dense VMEM scratch slabs that persist across the Q-tile steps. ---
    @pl.when(qi == 0)
    def _():
        x_full = x_ref[0]                 # (T, C)
        k_scr[...] = jnp.dot(x_full, wk_ref[...],
                             preferred_element_type=jnp.float32).astype(cd)
        v_scr[...] = jnp.dot(x_full, wv_ref[...],
                             preferred_element_type=jnp.float32).astype(cd)

    # --- Q projection for this tile (Wq pre-scaled by head_size**-0.5). ---
    q0 = pl.multiple_of(qi * tq, tq)
    xq = x_ref[0, pl.ds(q0, tq), :]       # (tq, C)
    q_scr[...] = jnp.dot(xq, wq_ref[...],
                         preferred_element_type=jnp.float32).astype(cd)

    # --- Causal mask for this Q tile, generated in-kernel (exact f32 -inf). ---
    row = lax.broadcasted_iota(jnp.int32, (tq, T), 0) + q0   # global query index
    col = lax.broadcasted_iota(jnp.int32, (tq, T), 1)        # key index
    masked = col > row                                       # future keys

    # --- Per-head attention. All slices are static *ref* windows (plain VMEM
    #     loads/stores) -- no lane-offset slicing of live values, no concatenate. ---
    for h in range(H):                    # small H -> unrolled at trace time
        lo, hi = h * hs, (h + 1) * hs
        q_h = q_scr[:, lo:hi]             # (tq, hs)
        k_h = k_scr[:, lo:hi]             # (T,  hs)
        v_h = v_scr[:, lo:hi]             # (T,  hs)

        # Scores: contract the last dims directly (no in-kernel transpose).
        s = lax.dot_general(q_h, k_h, (((1,), (1,)), ((), ())),
                            preferred_element_type=jnp.float32)     # (tq, T)
        s = s + bias_ref[h].astype(jnp.float32)
        s = jnp.where(masked, -jnp.inf, s)

        # Softmax in f32; reciprocal goes to the EUP slot.
        m = jnp.max(s, axis=-1, keepdims=True)
        e = jnp.exp(s - m)
        denom = jnp.sum(e, axis=-1, keepdims=True)
        p = e * pl.reciprocal(denom, approx=True)
        # TODO(synk): attention-dropout omitted (identity in eval / dropout=0.0).

        y_scr[:, lo:hi] = jnp.dot(p.astype(cd), v_h,
                                  preferred_element_type=jnp.float32).astype(cd)

    # --- Output projection from the lane-dense head slab; lane-dense (tq, C) store. ---
    out = jnp.dot(y_scr[...], wp_ref[...],
                  preferred_element_type=jnp.float32) + bp_ref[...]
    # TODO(synk): output dropout omitted (identity in eval / dropout=0.0).
    o_ref[0] = out.astype(o_ref.dtype)


def _pick_q_tile(T):
    for cand in (512, 256, 128, 64, 32, 16, 8):
        if cand <= T and T % cand == 0:
            return cand
    return T


# ---------------------------------------------------------------------------
# Wrapper: weight packing/pre-transposing, RPE bias construction, pallas_call.
# ---------------------------------------------------------------------------
def multi_head_attention(x, params, *, num_heads, head_size, max_relative_distance,
                         compute_dtype=jnp.bfloat16):
    B, T, C = x.shape
    H, hs = num_heads, head_size
    wq, wk, wv = params["wq"], params["wk"], params["wv"]     # (H, hs, C)
    rel_emb = params["rel_emb"]                               # (num_buckets, H)
    wp, bp = params["wp"], params["bp"]                       # (C, H*hs), (C,)

    # --- pre-transpose projection weights (done once, outside the kernel) ---
    scale = jnp.asarray(hs, jnp.float32) ** -0.5
    # (H, hs, C) -> (C, H*hs) so that q[:, h*hs + d] == (x @ wq[h].T)[:, d]
    w_q = (jnp.transpose(wq, (2, 0, 1)).reshape(C, H * hs) * scale).astype(compute_dtype)
    w_k = jnp.transpose(wk, (2, 0, 1)).reshape(C, H * hs).astype(compute_dtype)
    w_v = jnp.transpose(wv, (2, 0, 1)).reshape(C, H * hs).astype(compute_dtype)
    wp_t = jnp.transpose(wp).astype(compute_dtype)            # (H*hs, C)
    bp2 = bp.reshape(1, C).astype(jnp.float32)

    # --- RPE-only additive bias (H, T, T) in bf16; the causal mask is generated
    #     in-kernel (keeps -inf exact, halves the bias DMA bytes). ---
    # TODO(synk): for very long T generate the RPE bias per tile in-kernel from the
    # tiny (num_buckets, H) table instead of materializing (H, T, T) in HBM.
    num_buckets = 2 * max_relative_distance + 1
    pos = jnp.arange(T)
    rel = pos[None, :] - pos[:, None]                          # key - query
    idx = jnp.clip(rel + max_relative_distance, 0, num_buckets - 1)
    rpe = jnp.transpose(rel_emb[idx], (2, 0, 1)).astype(compute_dtype)   # (H, T, T)

    x_c = x.astype(compute_dtype)      # halve x read bytes; kernel computes in bf16 anyway

    tq = _pick_q_tile(T)
    nq = T // tq

    kernel = functools.partial(mha_fused_kernel, num_heads=H, head_size=hs, q_tile=tq)

    # Explicit, generation-aware VMEM budget (<=56 MiB keeps v7x headroom).
    itm = jnp.dtype(compute_dtype).itemsize
    est = (2 * T * C * itm                      # x block (double-buffered)
           + 3 * C * H * hs * itm               # Wq/Wk/Wv (single-buffered)
           + H * hs * C * itm + 2 * C * 4       # Wp^T, bp
           + 2 * H * tq * T * itm               # bias tile (double-buffered)
           + 2 * tq * C * x.dtype.itemsize      # output block
           + (2 * T + 2 * tq) * H * hs * itm    # Q/K/V/Y scratch slabs
           + 4 * tq * T * 4)                    # f32 score / softmax working set
    vmem_limit = int(min(max(2 * est, 16 * 1024 * 1024), 56 * 1024 * 1024))

    resident = dict(pipeline_mode=pl.Buffered(1))   # constant index map -> single buffer

    # TODO(synk): for very long T add a flash-style in-kernel KV loop (online softmax)
    # with causal tile-skipping; Q tiling alone already bounds the score block to (tq, T).
    # TODO(synk): if C / H*hs are not multiples of 128, zero-padding the packed lane dims
    # would avoid masked partial stores (most visible on v5e).
    out = pl.pallas_call(
        kernel,
        out_shape=jax.ShapeDtypeStruct((B, T, C), x.dtype),
        grid=(B, nq),
        in_specs=[
            pl.BlockSpec((1, T, C), lambda b, q: (b, 0, 0)),              # x[b] (fetched once/batch)
            pl.BlockSpec((C, H * hs), lambda b, q: (0, 0), **resident),   # Wq (pre-scaled)
            pl.BlockSpec((C, H * hs), lambda b, q: (0, 0), **resident),   # Wk
            pl.BlockSpec((C, H * hs), lambda b, q: (0, 0), **resident),   # Wv
            pl.BlockSpec((H, tq, T), lambda b, q: (0, q, 0)),             # RPE bias tile (bf16)
            pl.BlockSpec((H * hs, C), lambda b, q: (0, 0), **resident),   # Wp^T
            pl.BlockSpec((1, C), lambda b, q: (0, 0), **resident),        # bp
        ],
        out_specs=pl.BlockSpec((1, tq, C), lambda b, q: (b, q, 0)),       # lane-dense store
        scratch_shapes=[
            pltpu.VMEM((tq, H * hs), compute_dtype),   # Q slab (current tile)
            pltpu.VMEM((T, H * hs), compute_dtype),    # K slab (whole sequence, per batch)
            pltpu.VMEM((T, H * hs), compute_dtype),    # V slab (whole sequence, per batch)
            pltpu.VMEM((tq, H * hs), compute_dtype),   # concatenated head outputs
        ],
        compiler_params=pltpu.CompilerParams(
            # Q-tile axis carries the per-batch K/V scratch -> must stay sequential.
            dimension_semantics=("parallel", "arbitrary"),
            vmem_limit_bytes=vmem_limit,
        ),
    )(x_c, w_q, w_k, w_v, rpe, wp_t, bp2)
    return out


# ---------------------------------------------------------------------------
# Pure-JAX reference (mirrors the PyTorch forward) for a correctness check
# ---------------------------------------------------------------------------
def reference(x, params, *, num_heads, head_size, max_relative_distance):
    B, T, C = x.shape
    num_buckets = 2 * max_relative_distance + 1
    pos = jnp.arange(T)
    rel = pos[None, :] - pos[:, None]
    idx = jnp.clip(rel + max_relative_distance, 0, num_buckets - 1)
    bias = jnp.transpose(params["rel_emb"][idx], (2, 0, 1))   # (H, T, T)

    tril = jnp.tril(jnp.ones((T, T)))
    outs = []
    for h in range(num_heads):
        q = x @ params["wq"][h].T
        k = x @ params["wk"][h].T
        v = x @ params["wv"][h].T
        w = (q @ jnp.swapaxes(k, -1, -2)) * (head_size ** -0.5)
        w = w + bias[h][None]
        w = jnp.where(tril == 0, -jnp.inf, w)
        w = jax.nn.softmax(w, axis=-1)
        outs.append(w @ v)
    y = jnp.concatenate(outs, axis=-1)
    return y @ params["wp"].T + params["bp"]


# ---------------------------------------------------------------------------
if __name__ == "__main__":
    B, T, C = 2, 8, 32
    num_heads, head_size = 4, 8
    max_relative_distance = 16
    num_buckets = 2 * max_relative_distance + 1

    key = jax.random.PRNGKey(0)
    kx, kq, kk, kv, ke, kp, kb = jax.random.split(key, 7)

    x = jax.random.normal(kx, (B, T, C), dtype=jnp.float32)
    params = {
        "wq": 0.1 * jax.random.normal(kq, (num_heads, head_size, C), dtype=jnp.float32),
        "wk": 0.1 * jax.random.normal(kk, (num_heads, head_size, C), dtype=jnp.float32),
        "wv": 0.1 * jax.random.normal(kv, (num_heads, head_size, C), dtype=jnp.float32),
        "rel_emb": 0.02 * jax.random.normal(ke, (num_buckets, num_heads), dtype=jnp.float32),
        "wp": 0.1 * jax.random.normal(kp, (C, num_heads * head_size), dtype=jnp.float32),
        "bp": 0.01 * jax.random.normal(kb, (C,), dtype=jnp.float32),
    }

    fn = jax.jit(functools.partial(
        multi_head_attention,
        num_heads=num_heads,
        head_size=head_size,
        max_relative_distance=max_relative_distance,
    ))
    out = jax.block_until_ready(fn(x, params))

    ref = reference(x, params, num_heads=num_heads, head_size=head_size,
                    max_relative_distance=max_relative_distance)
    assert out.shape == (B, T, C)
    # bf16 MXU operands + approx reciprocal -> tolerance looser than pure-f32 run.
    assert jnp.allclose(out, ref, atol=2e-2, rtol=2e-2), "mismatch vs reference"
    print("KERNEL_OK")
</pallas_src>

<mosaic_0001>
module attributes {stable_mosaic.version = 11 : i64} {
  func.func @mha_fused_kernel(%arg0: i32, %arg1: i32, %arg2: memref<1x8x32xbf16, #tpu.memory_space<vmem>>, %arg3: memref<32x32xbf16, #tpu.memory_space<vmem>>, %arg4: memref<32x32xbf16, #tpu.memory_space<vmem>>, %arg5: memref<32x32xbf16, #tpu.memory_space<vmem>>, %arg6: memref<4x8x8xbf16, #tpu.memory_space<vmem>>, %arg7: memref<32x32xbf16, #tpu.memory_space<vmem>>, %arg8: memref<1x32xf32, #tpu.memory_space<vmem>>, %arg9: memref<1x8x32xf32, #tpu.memory_space<vmem>>, %arg10: memref<8x32xbf16, #tpu.memory_space<vmem>>, %arg11: memref<8x32xbf16, #tpu.memory_space<vmem>>, %arg12: memref<8x32xbf16, #tpu.memory_space<vmem>>, %arg13: memref<8x32xbf16, #tpu.memory_space<vmem>>) attributes {dimension_semantics = [#tpu.dimension_semantics<parallel>, #tpu.dimension_semantics<arbitrary>], iteration_bounds = array<i64: 2, 1>, scalar_prefetch = 0 : i64, scratch_operands = 4 : i64, tpu.core_type = #tpu.core_type<tc>, window_params = [{transform_indices = @transform_0, window_bounds = array<i64: 1, 8, 32>}, {pipeline_mode = #tpu.pipeline_mode<synchronous>, transform_indices = @transform_1, window_bounds = array<i64: 32, 32>}, {pipeline_mode = #tpu.pipeline_mode<synchronous>, transform_indices = @transform_2, window_bounds = array<i64: 32, 32>}, {pipeline_mode = #tpu.pipeline_mode<synchronous>, transform_indices = @transform_3, window_bounds = array<i64: 32, 32>}, {transform_indices = @transform_4, window_bounds = array<i64: 4, 8, 8>}, {pipeline_mode = #tpu.pipeline_mode<synchronous>, transform_indices = @transform_5, window_bounds = array<i64: 32, 32>}, {pipeline_mode = #tpu.pipeline_mode<synchronous>, transform_indices = @transform_6, window_bounds = array<i64: 1, 32>}, {transform_indices = @transform_7, window_bounds = array<i64: 1, 8, 32>}]} {
    %c0_i32 = arith.constant 0 : i32
    %0 = arith.cmpi eq, %arg1, %c0_i32 : i32
    %1 = arith.extui %0 : i1 to i32
    %c0_i32_0 = arith.constant 0 : i32
    %2 = arith.cmpi ne, %1, %c0_i32_0 : i32
    scf.if %2 {
      %c0_74 = arith.constant 0 : index
      %c0_75 = arith.constant 0 : index
      %c0_76 = arith.constant 0 : index
      %122 = vector.load %arg2[%c0_74, %c0_75, %c0_76] : memref<1x8x32xbf16, #tpu.memory_space<vmem>>, vector<1x8x32xbf16>
      %123 = vector.shape_cast %122 : vector<1x8x32xbf16> to vector<8x32xbf16>
      %c0_77 = arith.constant 0 : index
      %c0_78 = arith.constant 0 : index
      %124 = vector.load %arg4[%c0_77, %c0_78] : memref<32x32xbf16, #tpu.memory_space<vmem>>, vector<32x32xbf16>
      %cst_79 = arith.constant dense<0.000000e+00> : vector<8x32xf32>
      %125 = tpu.matmul %123, %124, %cst_79 {dimension_numbers = #tpu.dot_dimension_numbers<[1], [0], [0], [1], [0, 0, 1, 1], [], []>} : vector<8x32xbf16>, vector<32x32xbf16>, vector<8x32xf32> -> vector<8x32xf32>
      %126 = arith.truncf %125 : vector<8x32xf32> to vector<8x32xbf16>
      %c0_80 = arith.constant 0 : index
      %c0_81 = arith.constant 0 : index
      %127 = vector.load %arg11[%c0_80, %c0_81] : memref<8x32xbf16, #tpu.memory_space<vmem>>, vector<8x32xbf16>
      tpu.vector_store %arg11[%c0_80, %c0_81], %126 {strides = array<i32>} : memref<8x32xbf16, #tpu.memory_space<vmem>>, vector<8x32xbf16>,
      %c0_82 = arith.constant 0 : index
      %c0_83 = arith.constant 0 : index
      %128 = vector.load %arg5[%c0_82, %c0_83] : memref<32x32xbf16, #tpu.memory_space<vmem>>, vector<32x32xbf16>
      %cst_84 = arith.constant dense<0.000000e+00> : vector<8x32xf32>
      %129 = tpu.matmul %123, %128, %cst_84 {dimension_numbers = #tpu.dot_dimension_numbers<[1], [0], [0], [1], [0, 0, 1, 1], [], []>} : vector<8x32xbf16>, vector<32x32xbf16>, vector<8x32xf32> -> vector<8x32xf32>
      %130 = arith.truncf %129 : vector<8x32xf32> to vector<8x32xbf16>
      %c0_85 = arith.constant 0 : index
      %c0_86 = arith.constant 0 : index
      %131 = vector.load %arg12[%c0_85, %c0_86] : memref<8x32xbf16, #tpu.memory_space<vmem>>, vector<8x32xbf16>
      tpu.vector_store %arg12[%c0_85, %c0_86], %130 {strides = array<i32>} : memref<8x32xbf16, #tpu.memory_space<vmem>>, vector<8x32xbf16>,
    } else {
    }
    %c8_i32 = arith.constant 8 : i32
    %3 = arith.muli %arg1, %c8_i32 : i32
    %4 = tpu.assume_multiple %3, 8 : i32
    %c0 = arith.constant 0 : index
    %5 = arith.index_cast %4 : i32 to index
    %c0_1 = arith.constant 0 : index
    %6 = vector.load %arg2[%c0, %5, %c0_1] : memref<1x8x32xbf16, #tpu.memory_space<vmem>>, vector<1x8x32xbf16>
    %7 = vector.shape_cast %6 : vector<1x8x32xbf16> to vector<8x32xbf16>
    %c0_2 = arith.constant 0 : index
    %c0_3 = arith.constant 0 : index
    %8 = vector.load %arg3[%c0_2, %c0_3] : memref<32x32xbf16, #tpu.memory_space<vmem>>, vector<32x32xbf16>
    %cst = arith.constant dense<0.000000e+00> : vector<8x32xf32>
    %9 = tpu.matmul %7, %8, %cst {dimension_numbers = #tpu.dot_dimension_numbers<[1], [0], [0], [1], [0, 0, 1, 1], [], []>} : vector<8x32xbf16>, vector<32x32xbf16>, vector<8x32xf32> -> vector<8x32xf32>
    %10 = arith.truncf %9 : vector<8x32xf32> to vector<8x32xbf16>
    %c0_4 = arith.constant 0 : index
    %c0_5 = arith.constant 0 : index
    %11 = vector.load %arg10[%c0_4, %c0_5] : memref<8x32xbf16, #tpu.memory_space<vmem>>, vector<8x32xbf16>
    tpu.vector_store %arg10[%c0_4, %c0_5], %10 {strides = array<i32>} : memref<8x32xbf16, #tpu.memory_space<vmem>>, vector<8x32xbf16>,
    %12 = tpu.iota {dimensions = array<i32: 0>} : vector<8x8xi32>
    %13 = vector.broadcast %4 : i32 to vector<8x8xi32>
    %14 = arith.addi %12, %13 : vector<8x8xi32>
    %15 = tpu.iota {dimensions = array<i32: 1>} : vector<8x8xi32>
    %16 = arith.cmpi sgt, %15, %14 : vector<8x8xi32>
    %c0_6 = arith.constant 0 : index
    %c0_7 = arith.constant 0 : index
    %17 = vector.load %arg10[%c0_6, %c0_7] : memref<8x32xbf16, #tpu.memory_space<vmem>>, vector<8x8xbf16>
    %c0_8 = arith.constant 0 : index
    %c0_9 = arith.constant 0 : index
    %18 = vector.load %arg11[%c0_8, %c0_9] : memref<8x32xbf16, #tpu.memory_space<vmem>>, vector<8x8xbf16>
    %c0_10 = arith.constant 0 : index
    %c0_11 = arith.constant 0 : index
    %19 = vector.load %arg12[%c0_10, %c0_11] : memref<8x32xbf16, #tpu.memory_space<vmem>>, vector<8x8xbf16>
    %cst_12 = arith.constant dense<0.000000e+00> : vector<8x8xf32>
    %20 = tpu.matmul %17, %18, %cst_12 {dimension_numbers = #tpu.dot_dimension_numbers<[1], [1], [0], [0], [0, 0, 1, 0], [], []>} : vector<8x8xbf16>, vector<8x8xbf16>, vector<8x8xf32> -> vector<8x8xf32>
    %c0_13 = arith.constant 0 : index
    %c0_14 = arith.constant 0 : index
    %c0_15 = arith.constant 0 : index
    %21 = vector.load %arg6[%c0_13, %c0_14, %c0_15] : memref<4x8x8xbf16, #tpu.memory_space<vmem>>, vector<1x8x8xbf16>
    %22 = vector.shape_cast %21 : vector<1x8x8xbf16> to vector<8x8xbf16>
    %23 = arith.extf %22 : vector<8x8xbf16> to vector<8x8xf32>
    %24 = arith.addf %20, %23 : vector<8x8xf32>
    %cst_16 = arith.constant 0xFF800000 : f32
    %25 = vector.broadcast %cst_16 : f32 to vector<8x8xf32>
    %26 = arith.select %16, %25, %24 : vector<8x8xi1>, vector<8x8xf32>
    %cst_17 = arith.constant dense<0xFF800000> : vector<8xf32>
    %27 = vector.multi_reduction <maximumf>, %26, %cst_17 [1] : vector<8x8xf32> to vector<8xf32>
    %28 = vector.shape_cast %27 : vector<8xf32> to vector<8x1xf32>
    %29 = vector.broadcast %28 : vector<8x1xf32> to vector<8x8xf32>
    %30 = arith.subf %26, %29 : vector<8x8xf32>
    %31 = math.exp %30 : vector<8x8xf32>
    %cst_18 = arith.constant dense<0.000000e+00> : vector<8xf32>
    %32 = vector.multi_reduction <add>, %31, %cst_18 [1] : vector<8x8xf32> to vector<8xf32>
    %33 = vector.shape_cast %32 : vector<8xf32> to vector<8x1xf32>
    %34 = tpu.reciprocal %33 {approx = true} : vector<8x1xf32> -> vector<8x1xf32>
    %35 = vector.broadcast %34 : vector<8x1xf32> to vector<8x8xf32>
    %36 = arith.mulf %31, %35 : vector<8x8xf32>
    %37 = arith.truncf %36 : vector<8x8xf32> to vector<8x8xbf16>
    %cst_19 = arith.constant dense<0.000000e+00> : vector<8x8xf32>
    %38 = tpu.matmul %37, %19, %cst_19 {dimension_numbers = #tpu.dot_dimension_numbers<[1], [0], [0], [1], [0, 0, 1, 1], [], []>} : vector<8x8xbf16>, vector<8x8xbf16>, vector<8x8xf32> -> vector<8x8xf32>
    %39 = arith.truncf %38 : vector<8x8xf32> to vector<8x8xbf16>
    %c0_20 = arith.constant 0 : index
    %c0_21 = arith.constant 0 : index
    %40 = vector.load %arg13[%c0_20, %c0_21] : memref<8x32xbf16, #tpu.memory_space<vmem>>, vector<8x8xbf16>
    tpu.vector_store %arg13[%c0_20, %c0_21], %39 {strides = array<i32>} : memref<8x32xbf16, #tpu.memory_space<vmem>>, vector<8x8xbf16>,
    %c0_22 = arith.constant 0 : index
    %c8 = arith.constant 8 : index
    %41 = vector.load %arg10[%c0_22, %c8] : memref<8x32xbf16, #tpu.memory_space<vmem>>, vector<8x8xbf16>
    %c0_23 = arith.constant 0 : index
    %c8_24 = arith.constant 8 : index
    %42 = vector.load %arg11[%c0_23, %c8_24] : memref<8x32xbf16, #tpu.memory_space<vmem>>, vector<8x8xbf16>
    %c0_25 = arith.constant 0 : index
    %c8_26 = arith.constant 8 : index
    %43 = vector.load %arg12[%c0_25, %c8_26] : memref<8x32xbf16, #tpu.memory_space<vmem>>, vector<8x8xbf16>
    %cst_27 = arith.constant dense<0.000000e+00> : vector<8x8xf32>
    %44 = tpu.matmul %41, %42, %cst_27 {dimension_numbers = #tpu.dot_dimension_numbers<[1], [1], [0], [0], [0, 0, 1, 0], [], []>} : vector<8x8xbf16>, vector<8x8xbf16>, vector<8x8xf32> -> vector<8x8xf32>
    %c1 = arith.constant 1 : index
    %c0_28 = arith.constant 0 : index
    %c0_29 = arith.constant 0 : index
    %45 = vector.load %arg6[%c1, %c0_28, %c0_29] : memref<4x8x8xbf16, #tpu.memory_space<vmem>>, vector<1x8x8xbf16>
    %46 = vector.shape_cast %45 : vector<1x8x8xbf16> to vector<8x8xbf16>
    %47 = arith.extf %46 : vector<8x8xbf16> to vector<8x8xf32>
    %48 = arith.addf %44, %47 : vector<8x8xf32>
    %cst_30 = arith.constant 0xFF800000 : f32
    %49 = vector.broadcast %cst_30 : f32 to vector<8x8xf32>
    %50 = arith.select %16, %49, %48 : vector<8x8xi1>, vector<8x8xf32>
    %cst_31 = arith.constant dense<0xFF800000> : vector<8xf32>
    %51 = vector.multi_reduction <maximumf>, %50, %cst_31 [1] : vector<8x8xf32> to vector<8xf32>
    %52 = vector.shape_cast %51 : vector<8xf32> to vector<8x1xf32>
    %53 = vector.broadcast %52 : vector<8x1xf32> to vector<8x8xf32>
    %54 = arith.subf %50, %53 : vector<8x8xf32>
    %55 = math.exp %54 : vector<8x8xf32>
    %cst_32 = arith.constant dense<0.000000e+00> : vector<8xf32>
    %56 = vector.multi_reduction <add>, %55, %cst_32 [1] : vector<8x8xf32> to vector<8xf32>
    %57 = vector.shape_cast %56 : vector<8xf32> to vector<8x1xf32>
    %58 = tpu.reciprocal %57 {approx = true} : vector<8x1xf32> -> vector<8x1xf32>
    %59 = vector.broadcast %58 : vector<8x1xf32> to vector<8x8xf32>
    %60 = arith.mulf %55, %59 : vector<8x8xf32>
    %61 = arith.truncf %60 : vector<8x8xf32> to vector<8x8xbf16>
    %cst_33 = arith.constant dense<0.000000e+00> : vector<8x8xf32>
    %62 = tpu.matmul %61, %43, %cst_33 {dimension_numbers = #tpu.dot_dimension_numbers<[1], [0], [0], [1], [0, 0, 1, 1], [], []>} : vector<8x8xbf16>, vector<8x8xbf16>, vector<8x8xf32> -> vector<8x8xf32>
    %63 = arith.truncf %62 : vector<8x8xf32> to vector<8x8xbf16>
    %c0_34 = arith.constant 0 : index
    %c8_35 = arith.constant 8 : index
    %64 = vector.load %arg13[%c0_34, %c8_35] : memref<8x32xbf16, #tpu.memory_space<vmem>>, vector<8x8xbf16>
    tpu.vector_store %arg13[%c0_34, %c8_35], %63 {strides = array<i32>} : memref<8x32xbf16, #tpu.memory_space<vmem>>, vector<8x8xbf16>,
    %c0_36 = arith.constant 0 : index
    %c16 = arith.constant 16 : index
    %65 = vector.load %arg10[%c0_36, %c16] : memref<8x32xbf16, #tpu.memory_space<vmem>>, vector<8x8xbf16>
    %c0_37 = arith.constant 0 : index
    %c16_38 = arith.constant 16 : index
    %66 = vector.load %arg11[%c0_37, %c16_38] : memref<8x32xbf16, #tpu.memory_space<vmem>>, vector<8x8xbf16>
    %c0_39 = arith.constant 0 : index
    %c16_40 = arith.constant 16 : index
    %67 = vector.load %arg12[%c0_39, %c16_40] : memref<8x32xbf16, #tpu.memory_space<vmem>>, vector<8x8xbf16>
    %cst_41 = arith.constant dense<0.000000e+00> : vector<8x8xf32>
    %68 = tpu.matmul %65, %66, %cst_41 {dimension_numbers = #tpu.dot_dimension_numbers<[1], [1], [0], [0], [0, 0, 1, 0], [], []>} : vector<8x8xbf16>, vector<8x8xbf16>, vector<8x8xf32> -> vector<8x8xf32>
    %c2 = arith.constant 2 : index
    %c0_42 = arith.constant 0 : index
    %c0_43 = arith.constant 0 : index
    %69 = vector.load %arg6[%c2, %c0_42, %c0_43] : memref<4x8x8xbf16, #tpu.memory_space<vmem>>, vector<1x8x8xbf16>
    %70 = vector.shape_cast %69 : vector<1x8x8xbf16> to vector<8x8xbf16>
    %71 = arith.extf %70 : vector<8x8xbf16> to vector<8x8xf32>
    %72 = arith.addf %68, %71 : vector<8x8xf32>
    %cst_44 = arith.constant 0xFF800000 : f32
    %73 = vector.broadcast %cst_44 : f32 to vector<8x8xf32>
    %74 = arith.select %16, %73, %72 : vector<8x8xi1>, vector<8x8xf32>
    %cst_45 = arith.constant dense<0xFF800000> : vector<8xf32>
    %75 = vector.multi_reduction <maximumf>, %74, %cst_45 [1] : vector<8x8xf32> to vector<8xf32>
    %76 = vector.shape_cast %75 : vector<8xf32> to vector<8x1xf32>
    %77 = vector.broadcast %76 : vector<8x1xf32> to vector<8x8xf32>
    %78 = arith.subf %74, %77 : vector<8x8xf32>
    %79 = math.exp %78 : vector<8x8xf32>
    %cst_46 = arith.constant dense<0.000000e+00> : vector<8xf32>
    %80 = vector.multi_reduction <add>, %79, %cst_46 [1] : vector<8x8xf32> to vector<8xf32>
    %81 = vector.shape_cast %80 : vector<8xf32> to vector<8x1xf32>
    %82 = tpu.reciprocal %81 {approx = true} : vector<8x1xf32> -> vector<8x1xf32>
    %83 = vector.broadcast %82 : vector<8x1xf32> to vector<8x8xf32>
    %84 = arith.mulf %79, %83 : vector<8x8xf32>
    %85 = arith.truncf %84 : vector<8x8xf32> to vector<8x8xbf16>
    %cst_47 = arith.constant dense<0.000000e+00> : vector<8x8xf32>
    %86 = tpu.matmul %85, %67, %cst_47 {dimension_numbers = #tpu.dot_dimension_numbers<[1], [0], [0], [1], [0, 0, 1, 1], [], []>} : vector<8x8xbf16>, vector<8x8xbf16>, vector<8x8xf32> -> vector<8x8xf32>
    %87 = arith.truncf %86 : vector<8x8xf32> to vector<8x8xbf16>
    %c0_48 = arith.constant 0 : index
    %c16_49 = arith.constant 16 : index
    %88 = vector.load %arg13[%c0_48, %c16_49] : memref<8x32xbf16, #tpu.memory_space<vmem>>, vector<8x8xbf16>
    tpu.vector_store %arg13[%c0_48, %c16_49], %87 {strides = array<i32>} : memref<8x32xbf16, #tpu.memory_space<vmem>>, vector<8x8xbf16>,
    %c0_50 = arith.constant 0 : index
    %c24 = arith.constant 24 : index
    %89 = vector.load %arg10[%c0_50, %c24] : memref<8x32xbf16, #tpu.memory_space<vmem>>, vector<8x8xbf16>
    %c0_51 = arith.constant 0 : index
    %c24_52 = arith.constant 24 : index
    %90 = vector.load %arg11[%c0_51, %c24_52] : memref<8x32xbf16, #tpu.memory_space<vmem>>, vector<8x8xbf16>
    %c0_53 = arith.constant 0 : index
    %c24_54 = arith.constant 24 : index
    %91 = vector.load %arg12[%c0_53, %c24_54] : memref<8x32xbf16, #tpu.memory_space<vmem>>, vector<8x8xbf16>
    %cst_55 = arith.constant dense<0.000000e+00> : vector<8x8xf32>
    %92 = tpu.matmul %89, %90, %cst_55 {dimension_numbers = #tpu.dot_dimension_numbers<[1], [1], [0], [0], [0, 0, 1, 0], [], []>} : vector<8x8xbf16>, vector<8x8xbf16>, vector<8x8xf32> -> vector<8x8xf32>
    %c3 = arith.constant 3 : index
    %c0_56 = arith.constant 0 : index
    %c0_57 = arith.constant 0 : index
    %93 = vector.load %arg6[%c3, %c0_56, %c0_57] : memref<4x8x8xbf16, #tpu.memory_space<vmem>>, vector<1x8x8xbf16>
    %94 = vector.shape_cast %93 : vector<1x8x8xbf16> to vector<8x8xbf16>
    %95 = arith.extf %94 : vector<8x8xbf16> to vector<8x8xf32>
    %96 = arith.addf %92, %95 : vector<8x8xf32>
    %cst_58 = arith.constant 0xFF800000 : f32
    %97 = vector.broadcast %cst_58 : f32 to vector<8x8xf32>
    %98 = arith.select %16, %97, %96 : vector<8x8xi1>, vector<8x8xf32>
    %cst_59 = arith.constant dense<0xFF800000> : vector<8xf32>
    %99 = vector.multi_reduction <maximumf>, %98, %cst_59 [1] : vector<8x8xf32> to vector<8xf32>
    %100 = vector.shape_cast %99 : vector<8xf32> to vector<8x1xf32>
    %101 = vector.broadcast %100 : vector<8x1xf32> to vector<8x8xf32>
    %102 = arith.subf %98, %101 : vector<8x8xf32>
    %103 = math.exp %102 : vector<8x8xf32>
    %cst_60 = arith.constant dense<0.000000e+00> : vector<8xf32>
    %104 = vector.multi_reduction <add>, %103, %cst_60 [1] : vector<8x8xf32> to vector<8xf32>
    %105 = vector.shape_cast %104 : vector<8xf32> to vector<8x1xf32>
    %106 = tpu.reciprocal %105 {approx = true} : vector<8x1xf32> -> vector<8x1xf32>
    %107 = vector.broadcast %106 : vector<8x1xf32> to vector<8x8xf32>
    %108 = arith.mulf %103, %107 : vector<8x8xf32>
    %109 = arith.truncf %108 : vector<8x8xf32> to vector<8x8xbf16>
    %cst_61 = arith.constant dense<0.000000e+00> : vector<8x8xf32>
    %110 = tpu.matmul %109, %91, %cst_61 {dimension_numbers = #tpu.dot_dimension_numbers<[1], [0], [0], [1], [0, 0, 1, 1], [], []>} : vector<8x8xbf16>, vector<8x8xbf16>, vector<8x8xf32> -> vector<8x8xf32>
    %111 = arith.truncf %110 : vector<8x8xf32> to vector<8x8xbf16>
    %c0_62 = arith.constant 0 : index
    %c24_63 = arith.constant 24 : index
    %112 = vector.load %arg13[%c0_62, %c24_63] : memref<8x32xbf16, #tpu.memory_space<vmem>>, vector<8x8xbf16>
    tpu.vector_store %arg13[%c0_62, %c24_63], %111 {strides = array<i32>} : memref<8x32xbf16, #tpu.memory_space<vmem>>, vector<8x8xbf16>,
    %c0_64 = arith.constant 0 : index
    %c0_65 = arith.constant 0 : index
    %113 = vector.load %arg13[%c0_64, %c0_65] : memref<8x32xbf16, #tpu.memory_space<vmem>>, vector<8x32xbf16>
    %c0_66 = arith.constant 0 : index
    %c0_67 = arith.constant 0 : index
    %114 = vector.load %arg7[%c0_66, %c0_67] : memref<32x32xbf16, #tpu.memory_space<vmem>>, vector<32x32xbf16>
    %cst_68 = arith.constant dense<0.000000e+00> : vector<8x32xf32>
    %115 = tpu.matmul %113, %114, %cst_68 {dimension_numbers = #tpu.dot_dimension_numbers<[1], [0], [0], [1], [0, 0, 1, 1], [], []>} : vector<8x32xbf16>, vector<32x32xbf16>, vector<8x32xf32> -> vector<8x32xf32>
    %c0_69 = arith.constant 0 : index
    %c0_70 = arith.constant 0 : index
    %116 = vector.load %arg8[%c0_69, %c0_70] : memref<1x32xf32, #tpu.memory_space<vmem>>, vector<1x32xf32>
    %117 = vector.broadcast %116 : vector<1x32xf32> to vector<8x32xf32>
    %118 = arith.addf %115, %117 : vector<8x32xf32>
    %c0_71 = arith.constant 0 : index
    %c0_72 = arith.constant 0 : index
    %c0_73 = arith.constant 0 : index
    %119 = vector.load %arg9[%c0_71, %c0_72, %c0_73] : memref<1x8x32xf32, #tpu.memory_space<vmem>>, vector<1x8x32xf32>
    %120 = vector.shape_cast %119 : vector<1x8x32xf32> to vector<8x32xf32>
    %121 = vector.shape_cast %118 : vector<8x32xf32> to vector<1x8x32xf32>
    tpu.vector_store %arg9[%c0_71, %c0_72, %c0_73], %121 {strides = array<i32>} : memref<1x8x32xf32, #tpu.memory_space<vmem>>, vector<1x8x32xf32>,
    return
  }
  func.func @transform_0(%arg0: i32, %arg1: i32) -> (i32, i32, i32) {
    %c0_i32 = arith.constant 0 : i32
    %c0_i32_0 = arith.constant 0 : i32
    %c0_i32_1 = arith.constant 0 : i32
    return %arg0, %c0_i32, %c0_i32_0 : i32, i32, i32
  }
  func.func @transform_1(%arg0: i32, %arg1: i32) -> (i32, i32) {
    %c0_i32 = arith.constant 0 : i32
    %c0_i32_0 = arith.constant 0 : i32
    %c0_i32_1 = arith.constant 0 : i32
    return %c0_i32, %c0_i32_0 : i32, i32
  }
  func.func @transform_2(%arg0: i32, %arg1: i32) -> (i32, i32) {
    %c0_i32 = arith.constant 0 : i32
    %c0_i32_0 = arith.constant 0 : i32
    %c0_i32_1 = arith.constant 0 : i32
    return %c0_i32, %c0_i32_0 : i32, i32
  }
  func.func @transform_3(%arg0: i32, %arg1: i32) -> (i32, i32) {
    %c0_i32 = arith.constant 0 : i32
    %c0_i32_0 = arith.constant 0 : i32
    %c0_i32_1 = arith.constant 0 : i32
    return %c0_i32, %c0_i32_0 : i32, i32
  }
  func.func @transform_4(%arg0: i32, %arg1: i32) -> (i32, i32, i32) {
    %c0_i32 = arith.constant 0 : i32
    %c0_i32_0 = arith.constant 0 : i32
    %c0_i32_1 = arith.constant 0 : i32
    return %c0_i32, %arg1, %c0_i32_0 : i32, i32, i32
  }
  func.func @transform_5(%arg0: i32, %arg1: i32) -> (i32, i32) {
    %c0_i32 = arith.constant 0 : i32
    %c0_i32_0 = arith.constant 0 : i32
    %c0_i32_1 = arith.constant 0 : i32
    return %c0_i32, %c0_i32_0 : i32, i32
  }
  func.func @transform_6(%arg0: i32, %arg1: i32) -> (i32, i32) {
    %c0_i32 = arith.constant 0 : i32
    %c0_i32_0 = arith.constant 0 : i32
    %c0_i32_1 = arith.constant 0 : i32
    return %c0_i32, %c0_i32_0 : i32, i32
  }
  func.func @transform_7(%arg0: i32, %arg1: i32) -> (i32, i32, i32) {
    %c0_i32 = arith.constant 0 : i32
    %c0_i32_0 = arith.constant 0 : i32
    return %arg0, %arg1, %c0_i32 : i32, i32, i32
  }
}

</mosaic_0001>

<llo_original>
// kernel: multi_head_attention.1
$region0: #{multi_head_attention.1}
  #allocation0 [shape = 'u32[]', space=smem, size = 0x4, offset = 0x4, fixed_abs, tag = 'smem constant byte address 0x4 - core index']
  #allocation1 [shape = 'u32[144,128]{1,0:T(1,128)}', space=vmem, size = 0x12000, scoped, tag = 'internal scratch']
  #allocation2 [shape = 'bf16[8,32]{1,0:T(8,128)(2,1)}', space=vmem, size = 0x800, scoped, tag = 'scratch operand']
  #allocation3 [shape = 'bf16[8,32]{1,0:T(8,128)(2,1)}', space=vmem, size = 0x800, scoped, tag = 'scratch operand']
  #allocation4 [shape = 'bf16[8,32]{1,0:T(8,128)(2,1)}', space=vmem, size = 0x800, scoped, tag = 'scratch operand']
  #allocation5 [shape = 'bf16[8,32]{1,0:T(8,128)(2,1)}', space=vmem, size = 0x800, scoped, tag = 'scratch operand']
  %s0 = inlined_call_operand.vmem [shape: bf16[2,8,32], index: 0, kind: input, shape index: {}]
  %s1 = inlined_call_operand.vmem [shape: bf16[32,32], index: 1, kind: input, shape index: {}]
  %s2 = inlined_call_operand.vmem [shape: bf16[32,32], index: 2, kind: input, shape index: {}]
  %s3 = inlined_call_operand.vmem [shape: bf16[32,32], index: 3, kind: input, shape index: {}]
  %s4 = inlined_call_operand.vmem [shape: bf16[4,8,8], index: 4, kind: input, shape index: {}]
  %s5 = inlined_call_operand.vmem [shape: bf16[32,32], index: 5, kind: input, shape index: {}]
  %s6 = inlined_call_operand.vmem [shape: f32[1,32], index: 6, kind: input, shape index: {}]
  %s7 = inlined_call_operand.hbm [shape: f32[2,8,32], index: 7, kind: output, shape index: {}]
  %s8 = sld [smem:[#allocation0]]
  $region65: #{multi_head_attention.1} parent=0
    _
  %s10 = ssub.s32 1, %s8
  %s11 = scalar_select 0, %s10, %s8
  $region1: #{multi_head_attention.1} parent=0
    #allocation6 [shape = 'u8[8192]{0}', space=vmem, size = 0x2000, scoped, tag = 'output window, operand 0']
    #allocation7 [shape = 's32[2]{0}', space=sflag, size = 0x8, scoped, tag = 'scoped memory for multi_head_attention.1']
    %12 = vsyncpa [#allocation7], 0
    %s13 = scalar_lea.sflag [#allocation7], 1
    %14 = vsyncpa %s13, 0
    loop: start=0, step=1, limit=4
    $region2: #{multi_head_attention.1} parent=1 // loop_pre_header
      _
    $region3: #{multi_head_attention.1} parent=1 // loop_header
      %s16 = sphi 0, %s20
      %p17 = scmp.ge.s32.totalorder %s16, 4
      %s23 = sphi 0, %s35
      %s24 = sphi 0, %s31
      %s25 = sphi 0, %s23
      %s26 = sphi 0, %s24
      %s27 = sphi 0, %s25
      %s28 = sphi 0, %s26
      %s38 = sphi 0, %s40
      %s41 = sphi 0, %s38
      %s42 = sphi 0, %s41
      %s58 = sphi 0, %s42
      %s62 = sphi 0, %s62
      %s64 = sphi 0, %s62
      %s65 = sphi 0, %s64
      %s79 = sphi 0, %s65
      %s83 = sphi 0, %s83
      %s85 = sphi 0, %s83
      %s86 = sphi 0, %s85
      %s100 = sphi 0, %s86
      %s104 = sphi 0, %s104
      %s106 = sphi 0, %s104
      %s107 = sphi 0, %s106
      %s121 = sphi 0, %s107
      %s127 = sphi 0, %s129
      %s130 = sphi 0, %s127
      %s131 = sphi 0, %s130
      %s147 = sphi 0, %s131
      %s151 = sphi 0, %s151
      %s153 = sphi 0, %s151
      %s154 = sphi 0, %s153
      %s168 = sphi 0, %s154
      %s172 = sphi 0, %s172
      %s174 = sphi 0, %s172
      %s175 = sphi 0, %s174
      %s189 = sphi 0, %s175
      %s197 = sphi 0, %s199
      %s200 = sphi 0, %s197
      %s201 = sphi 0, %s200
      %s217 = sphi 0, %s201
    $region4: #{multi_head_attention.1} parent=1 // loop_header_branch
      %19 = sbr.rel (%p17) target = $region8
    $region5: #{multi_head_attention.1} parent=1 // loop_body
      %s21 = ssub.s32 %s16, 1
      %s22 = ssub.s32 %s16, 2
      %s29 = sadd.s32 1, %s24
      %p30 = scmp.ge.s32.totalorder %s29, 1
      %s31 = scalar_select %p30, 0, %s29
      %s32 = sadd.s32 1, %s23
      %s33 = scalar_select %p30, %s32, %s23
      %p34 = scmp.ge.s32.totalorder %s33, 2
      %s35 = scalar_select %p34, 0, %s33
      %s36 = ssub.s32 %s23, %s35
      %p37 = scmp.eq.s32.totalorder %s36, 0
      %s39 = sadd.s32 %s38, 1
      %s40 = scalar_select %p37, %s38, %s39
      %p43 = pneg %p37
      %p44 = scmp.eq.s32.totalorder %s16, 1
      %p45 = por %p43, %p44
      %p46 = scmp.ne.s32.totalorder %s38, %s41
      %p47 = scmp.eq.s32.totalorder %s16, 0
      %p48 = por %p46, %p47
      %p49 = scmp.ne.s32.totalorder %s38, %s41
      %p50 = scmp.eq.s32.totalorder %s21, 1
      %p51 = por %p49, %p50
      %p52 = scmp.ne.s32.totalorder %s41, %s42
      %p53 = scmp.eq.s32.totalorder %s21, 0
      %p54 = por %p52, %p53
      %p55 = scmp.ne.s32.totalorder %s41, %s42
      %p56 = scmp.eq.s32.totalorder %s22, 1
      %p57 = por %p55, %p56
      %p59 = scmp.ne.s32.totalorder %s42, %s58
      %p60 = scmp.eq.s32.totalorder %s22, 0
      %p61 = por %p59, %p60
      %s63 = sadd.s32 %s62, 1
      %p66 = scmp.eq.s32.totalorder %s16, 1
      %p67 = scmp.ne.s32.totalorder %s62, %s64
      %p68 = scmp.eq.s32.totalorder %s16, 0
      %p69 = por %p67, %p68
      %p70 = scmp.ne.s32.totalorder %s62, %s64
      %p71 = scmp.eq.s32.totalorder %s21, 1
      %p72 = por %p70, %p71
      %p73 = scmp.ne.s32.totalorder %s64, %s65
      %p74 = scmp.eq.s32.totalorder %s21, 0
      %p75 = por %p73, %p74
      %p76 = scmp.ne.s32.totalorder %s64, %s65
      %p77 = scmp.eq.s32.totalorder %s22, 1
      %p78 = por %p76, %p77
      %p80 = scmp.ne.s32.totalorder %s65, %s79
      %p81 = scmp.eq.s32.totalorder %s22, 0
      %p82 = por %p80, %p81
      %s84 = sadd.s32 %s83, 1
      %p87 = scmp.eq.s32.totalorder %s16, 1
      %p88 = scmp.ne.s32.totalorder %s83, %s85
      %p89 = scmp.eq.s32.totalorder %s16, 0
      %p90 = por %p88, %p89
      %p91 = scmp.ne.s32.totalorder %s83, %s85
      %p92 = scmp.eq.s32.totalorder %s21, 1
      %p93 = por %p91, %p92
      %p94 = scmp.ne.s32.totalorder %s85, %s86
      %p95 = scmp.eq.s32.totalorder %s21, 0
      %p96 = por %p94, %p95
      %p97 = scmp.ne.s32.totalorder %s85, %s86
      %p98 = scmp.eq.s32.totalorder %s22, 1
      %p99 = por %p97, %p98
      %p101 = scmp.ne.s32.totalorder %s86, %s100
      %p102 = scmp.eq.s32.totalorder %s22, 0
      %p103 = por %p101, %p102
      %s105 = sadd.s32 %s104, 1
      %p108 = scmp.eq.s32.totalorder %s16, 1
      %p109 = scmp.ne.s32.totalorder %s104, %s106
      %p110 = scmp.eq.s32.totalorder %s16, 0
      %p111 = por %p109, %p110
      %p112 = scmp.ne.s32.totalorder %s104, %s106
      %p113 = scmp.eq.s32.totalorder %s21, 1
      %p114 = por %p112, %p113
      %p115 = scmp.ne.s32.totalorder %s106, %s107
      %p116 = scmp.eq.s32.totalorder %s21, 0
      %p117 = por %p115, %p116
      %p118 = scmp.ne.s32.totalorder %s106, %s107
      %p119 = scmp.eq.s32.totalorder %s22, 1
      %p120 = por %p118, %p119
      %p122 = scmp.ne.s32.totalorder %s107, %s121
      %p123 = scmp.eq.s32.totalorder %s22, 0
      %p124 = por %p122, %p123
      %s125 = ssub.s32 %s24, %s31
      %p126 = scmp.eq.s32.totalorder %s125, 0
      %s128 = sadd.s32 %s127, 1
      %s129 = scalar_select %p126, %s127, %s128
      %p132 = pneg %p126
      %p133 = scmp.eq.s32.totalorder %s16, 1
      %p134 = por %p132, %p133
      %p135 = scmp.ne.s32.totalorder %s127, %s130
      %p136 = scmp.eq.s32.totalorder %s16, 0
      %p137 = por %p135, %p136
      %p138 = scmp.ne.s32.totalorder %s127, %s130
      %p139 = scmp.eq.s32.totalorder %s21, 1
      %p140 = por %p138, %p139
      %p141 = scmp.ne.s32.totalorder %s130, %s131
      %p142 = scmp.eq.s32.totalorder %s21, 0
      %p143 = por %p141, %p142
      %p144 = scmp.ne.s32.totalorder %s130, %s131
      %p145 = scmp.eq.s32.totalorder %s22, 1
      %p146 = por %p144, %p145
      %p148 = scmp.ne.s32.totalorder %s131, %s147
      %p149 = scmp.eq.s32.totalorder %s22, 0
      %p150 = por %p148, %p149
      %s152 = sadd.s32 %s151, 1
      %p155 = scmp.eq.s32.totalorder %s16, 1
      %p156 = scmp.ne.s32.totalorder %s151, %s153
      %p157 = scmp.eq.s32.totalorder %s16, 0
      %p158 = por %p156, %p157
      %p159 = scmp.ne.s32.totalorder %s151, %s153
      %p160 = scmp.eq.s32.totalorder %s21, 1
      %p161 = por %p159, %p160
      %p162 = scmp.ne.s32.totalorder %s153, %s154
      %p163 = scmp.eq.s32.totalorder %s21, 0
      %p164 = por %p162, %p163
      %p165 = scmp.ne.s32.totalorder %s153, %s154
      %p166 = scmp.eq.s32.totalorder %s22, 1
      %p167 = por %p165, %p166
      %p169 = scmp.ne.s32.totalorder %s154, %s168
      %p170 = scmp.eq.s32.totalorder %s22, 0
      %p171 = por %p169, %p170
      %s173 = sadd.s32 %s172, 1
      %p176 = scmp.eq.s32.totalorder %s16, 1
      %p177 = scmp.ne.s32.totalorder %s172, %s174
      %p178 = scmp.eq.s32.totalorder %s16, 0
      %p179 = por %p177, %p178
      %p180 = scmp.ne.s32.totalorder %s172, %s174
      %p181 = scmp.eq.s32.totalorder %s21, 1
      %p182 = por %p180, %p181
      %p183 = scmp.ne.s32.totalorder %s174, %s175
      %p184 = scmp.eq.s32.totalorder %s21, 0
      %p185 = por %p183, %p184
      %p186 = scmp.ne.s32.totalorder %s174, %s175
      %p187 = scmp.eq.s32.totalorder %s22, 1
      %p188 = por %p186, %p187
      %p190 = scmp.ne.s32.totalorder %s175, %s189
      %p191 = scmp.eq.s32.totalorder %s22, 0
      %p192 = por %p190, %p191
      %s193 = ssub.s32 %s23, %s35
      %s194 = ssub.s32 %s24, %s31
      %s195 = sor.u32 %s193, %s194
      %p196 = scmp.eq.s32.totalorder %s195, 0
      %s198 = sadd.s32 %s197, 1
      %s199 = scalar_select %p196, %s197, %s198
      %p202 = pneg %p196
      %p203 = scmp.eq.s32.totalorder %s16, 1
      %p204 = por %p202, %p203
      %p205 = scmp.ne.s32.totalorder %s197, %s200
      %p206 = scmp.eq.s32.totalorder %s16, 0
      %p207 = por %p205, %p206
      %p208 = scmp.ne.s32.totalorder %s197, %s200
      %p209 = scmp.eq.s32.totalorder %s21, 1
      %p210 = por %p208, %p209
      %p211 = scmp.ne.s32.totalorder %s200, %s201
      %p212 = scmp.eq.s32.totalorder %s21, 0
      %p213 = por %p211, %p212
      %p214 = scmp.ne.s32.totalorder %s200, %s201
      %p215 = scmp.eq.s32.totalorder %s22, 1
      %p216 = por %p214, %p215
      %p218 = scmp.ne.s32.totalorder %s201, %s217
      %p219 = scmp.eq.s32.totalorder %s22, 0
      %p220 = por %p218, %p219
      %p221 = scmp.le.s32.totalorder 1, %s16
      %p222 = scmp.lt.s32.totalorder %s16, 3
      %p223 = pnand %p221, %p222
      %p224 = pneg %p223
      // Predicated region
      $region9: #{multi_head_attention.1} parent=5 // pred_check
        _
      $region10: #{multi_head_attention.1} parent=5 // pred_check_branch
        %226 = sbr.rel (%p223) target = $region12
      $region11: #{multi_head_attention.1} parent=5 // pred_region
        %s227 = ssub.s32 %s16, 1
        // Predicated region
        $region13: #{multi_head_attention.1} parent=11 // pred_check
          %p228 = pneg %p75
        $region14: #{multi_head_attention.1} parent=11 // pred_check_branch
          %230 = sbr.rel (%p228) target = $region16
        $region15: #{multi_head_attention.1} parent=11 // pred_region
          _
        $region16: #{multi_head_attention.1} parent=11 // pred_fallthru
          _
        // Predicated region
        $region17: #{multi_head_attention.1} parent=11 // pred_check
          %p231 = pneg %p96
        $region18: #{multi_head_attention.1} parent=11 // pred_check_branch
          %233 = sbr.rel (%p231) target = $region20
        $region19: #{multi_head_attention.1} parent=11 // pred_region
          _
        $region20: #{multi_head_attention.1} parent=11 // pred_fallthru
          _
        // Predicated region
        $region21: #{multi_head_attention.1} parent=11 // pred_check
          %p234 = pneg %p117
        $region22: #{multi_head_attention.1} parent=11 // pred_check_branch
          %236 = sbr.rel (%p234) target = $region24
        $region23: #{multi_head_attention.1} parent=11 // pred_region
          _
        $region24: #{multi_head_attention.1} parent=11 // pred_fallthru
          _
        // Predicated region
        $region25: #{multi_head_attention.1} parent=11 // pred_check
          %p237 = pneg %p143
        $region26: #{multi_head_attention.1} parent=11 // pred_check_branch
          %239 = sbr.rel (%p237) target = $region28
        $region27: #{multi_head_attention.1} parent=11 // pred_region
          %p240 = scmp.lt.s32.totalorder %s26, 0
          %s241 = scalar_select %p240, %s26, 0
          %s242 = smul.addr %s241, 4
          %s243 = scalar_lea.vmem %s4, %s242
        $region28: #{multi_head_attention.1} parent=11 // pred_fallthru
          _
        // Predicated region
        $region29: #{multi_head_attention.1} parent=11 // pred_check
          %p244 = pneg %p164
        $region30: #{multi_head_attention.1} parent=11 // pred_check_branch
          %246 = sbr.rel (%p244) target = $region32
        $region31: #{multi_head_attention.1} parent=11 // pred_region
          _
        $region32: #{multi_head_attention.1} parent=11 // pred_fallthru
          _
        // Predicated region
        $region33: #{multi_head_attention.1} parent=11 // pred_check
          %p247 = pneg %p185
        $region34: #{multi_head_attention.1} parent=11 // pred_check_branch
          %249 = sbr.rel (%p247) target = $region36
        $region35: #{multi_head_attention.1} parent=11 // pred_region
          _
        $region36: #{multi_head_attention.1} parent=11 // pred_fallthru
          _
      $region12: #{multi_head_attention.1} parent=5 // pred_fallthru
        _
      %p250 = scmp.lt.s32.totalorder %s16, 2
      // Predicated region
      $region37: #{multi_head_attention.1} parent=5 // pred_check
        %p251 = pneg %p250
      $region38: #{multi_head_attention.1} parent=5 // pred_check_branch
        %253 = sbr.rel (%p251) target = $region40
      $region39: #{multi_head_attention.1} parent=5 // pred_region
        // Predicated region
        $region41: #{multi_head_attention.1} parent=39 // pred_check
          %p254 = pneg %p48
        $region42: #{multi_head_attention.1} parent=39 // pred_check_branch
          %256 = sbr.rel (%p254) target = $region44
        $region43: #{multi_head_attention.1} parent=39 // pred_region
          %p257 = scmp.lt.s32.totalorder %s23, 1
          %s258 = scalar_select %p257, %s23, 1
          %s259 = smul.addr %s258, 4
          %s260 = scalar_lea.vmem %s0, %s259
        $region44: #{multi_head_attention.1} parent=39 // pred_fallthru
          _
      $region40: #{multi_head_attention.1} parent=5 // pred_fallthru
        _
      %p261 = scmp.le.s32.totalorder 1, %s16
      %p262 = scmp.lt.s32.totalorder %s16, 3
      %p263 = pnand %p261, %p262
      %p264 = pneg %p263
      // Predicated region
      $region45: #{multi_head_attention.1} parent=5 // pred_check
        _
      $region46: #{multi_head_attention.1} parent=5 // pred_check_branch
        %266 = sbr.rel (%p263) target = $region48
      $region47: #{multi_head_attention.1} parent=5 // pred_region
        %s267 = ssub.s32 %s16, 1
        %p268 = scmp.lt.s32.totalorder %s25, 1
        %s269 = scalar_select %p268, %s25, 1
        %s270 = smul.addr %s269, 4
        %s271 = scalar_lea.vmem %s0, %s270
        %p272 = pneg %p54
        %p273 = pneg %p51
        %p274 = pneg %p75
        %p275 = pneg %p72
        %p276 = pneg %p96
        %p277 = pneg %p93
        %p278 = pneg %p117
        %p279 = pneg %p114
        %p280 = scmp.lt.s32.totalorder %s26, 0
        %s281 = scalar_select %p280, %s26, 0
        %s282 = smul.addr %s281, 4
        %s283 = scalar_lea.vmem %s4, %s282
        %p284 = pneg %p143
        %p285 = pneg %p140
        %p286 = pneg %p164
        %p287 = pneg %p161
        %p288 = pneg %p185
        %p289 = pneg %p182
        %p290 = pneg %p213
        %p291 = pneg %p210
        %s292 = sand.u32 %s200, 1
        %s293 = scalar_lea.sflag [#allocation7], %s292
        %s294 = sand.u32 %s200, 1
        %s295 = smul.addr %s294, 8
        %s296 = scalar_lea.vmem [#allocation6], %s295
        %p297 = scmp.lt.s32.totalorder %s25, 1
        %s298 = scalar_select %p297, %s25, 1
        %s299 = smul.addr %s298, 4
        %s300 = scalar_lea.vmem %s0, %s299
        %p301 = scmp.lt.s32.totalorder %s26, 0
        %s302 = scalar_select %p301, %s26, 0
        %s303 = smul.addr %s302, 4
        %s304 = scalar_lea.vmem %s4, %s303
        %p306 = scmp.eq.s32.totalorder %s26, 0
        // Predicated region
        $region49: #{multi_head_attention.1} parent=47 // pred_check
          %p307 = pneg %p306
        $region50: #{multi_head_attention.1} parent=47 // pred_check_branch
          %309 = sbr.rel (%p307) target = $region52
        $region51: #{multi_head_attention.1} parent=47 // pred_region
          %v310 = vld [vmem:[%s300] sm:$0xf]
          %v311 = vld [vmem:[%s2] sm:$0xf]
          %v312 = vld [vmem:[%s2 + $0x4] sm:$0xf]
          %v313 = vld [vmem:[%s2 + $0x8] sm:$0xf]
          %v314 = vld [vmem:[%s2 + $0xc] sm:$0xf]
          %v319 = vunpack.c.l.b16 %v311
          %v320 = vunpack.c.l.b16 %v312
          %v321 = vunpack.c.l.b16 %v313
          %v322 = vunpack.c.l.b16 %v314
          %v323 = vpack.c.b16 %v320, %v319
          %v324 = vpack.c.b16 %v322, %v321
          %vm327 = vcmask 261120
          %v329 = vsel %vm327, %v310, 0
          %331 = vmatprep.subr.bf16.mxu0 0
          %332 = vmatpush1.bf16.msra.mxu0 %v323
          %333 = vmatprep.subr.bf16.mxu0 0
          %334 = vmatpush1.bf16.msra.mxu0 %v324
          %335 = vmatprep.subr.bf16.mxu0 0
          %336 = vmatpush1.bf16.msra.mxu0 0
          %337 = vmatprep.subr.bf16.mxu0 0
          %338 = vmatpush1.bf16.msra.mxu0 0
          %339 = vmatprep.subr.bf16.mxu0 0
          %340 = vmatpush1.bf16.msra.mxu0 0
          %341 = vmatprep.subr.bf16.mxu0 0
          %342 = vmatpush1.bf16.msra.mxu0 0
          %343 = vmatprep.subr.bf16.mxu0 0
          %344 = vmatpush1.bf16.msra.mxu0 0
          %345 = vmatprep.subr.bf16.mxu0 0
          %346 = vmatpush1.bf16.msra.mxu0 0
          %347 = vmatprep.subr.bf16.mxu0 0
          %348 = vmatpush1.bf16.msra.mxu0 0
          %349 = vmatprep.subr.bf16.mxu0 0
          %350 = vmatpush1.bf16.msra.mxu0 0
          %351 = vmatprep.subr.bf16.mxu0 0
          %352 = vmatpush1.bf16.msra.mxu0 0
          %353 = vmatprep.subr.bf16.mxu0 0
          %354 = vmatpush1.bf16.msra.mxu0 0
          %355 = vmatprep.subr.bf16.mxu0 0
          %356 = vmatpush1.bf16.msra.mxu0 0
          %357 = vmatprep.subr.bf16.mxu0 0
          %358 = vmatpush1.bf16.msra.mxu0 0
          %359 = vmatprep.subr.bf16.mxu0 0
          %360 = vmatpush1.bf16.msra.mxu0 0
          %361 = vmatprep.subr.bf16.mxu0 0
          %362 = vmatpush1.bf16.msra.mxu0 0
          %363 = vmatprep.mubr.bf16.mxu0 0
          %364 = vmatmul.mubr.bf16.gmra.mrb[0].mxu0 %v329
          %v365 = vpop.f32.mrb[0].mxu0
          %v366 = vadd.f32 0.0, %v365
          %v367 = vpop.f32.mrb[0].mxu0
          %v368 = vpop.f32.mrb[0].mxu0
          %v369 = vpop.f32.mrb[0].mxu0
          %370 = vdwg.mxu0
          %v371 = vpack.c.bf16 %v366, %v366
          %vm372 = vcmask 257024
          %373 = vst.msk [vmem:[#allocation3] sm:$0xf] %vm372, %v371
          %v374 = vld [vmem:[%s3] sm:$0xf]
          %v375 = vld [vmem:[%s3 + $0x4] sm:$0xf]
          %v376 = vld [vmem:[%s3 + $0x8] sm:$0xf]
          %v377 = vld [vmem:[%s3 + $0xc] sm:$0xf]
          %v382 = vunpack.c.l.b16 %v374
          %v383 = vunpack.c.l.b16 %v375
          %v384 = vunpack.c.l.b16 %v376
          %v385 = vunpack.c.l.b16 %v377
          %v386 = vpack.c.b16 %v383, %v382
          %v387 = vpack.c.b16 %v385, %v384
          %390 = vmatprep.subr.bf16.mxu0 0
          %391 = vmatpush1.bf16.msra.mxu0 %v386
          %392 = vmatprep.subr.bf16.mxu0 0
          %393 = vmatpush1.bf16.msra.mxu0 %v387
          %394 = vmatprep.subr.bf16.mxu0 0
          %395 = vmatpush1.bf16.msra.mxu0 0
          %396 = vmatprep.subr.bf16.mxu0 0
          %397 = vmatpush1.bf16.msra.mxu0 0
          %398 = vmatprep.subr.bf16.mxu0 0
          %399 = vmatpush1.bf16.msra.mxu0 0
          %400 = vmatprep.subr.bf16.mxu0 0
          %401 = vmatpush1.bf16.msra.mxu0 0
          %402 = vmatprep.subr.bf16.mxu0 0
          %403 = vmatpush1.bf16.msra.mxu0 0
          %404 = vmatprep.subr.bf16.mxu0 0
          %405 = vmatpush1.bf16.msra.mxu0 0
          %406 = vmatprep.subr.bf16.mxu0 0
          %407 = vmatpush1.bf16.msra.mxu0 0
          %408 = vmatprep.subr.bf16.mxu0 0
          %409 = vmatpush1.bf16.msra.mxu0 0
          %410 = vmatprep.subr.bf16.mxu0 0
          %411 = vmatpush1.bf16.msra.mxu0 0
          %412 = vmatprep.subr.bf16.mxu0 0
          %413 = vmatpush1.bf16.msra.mxu0 0
          %414 = vmatprep.subr.bf16.mxu0 0
          %415 = vmatpush1.bf16.msra.mxu0 0
          %416 = vmatprep.subr.bf16.mxu0 0
          %417 = vmatpush1.bf16.msra.mxu0 0
          %418 = vmatprep.subr.bf16.mxu0 0
          %419 = vmatpush1.bf16.msra.mxu0 0
          %420 = vmatprep.subr.bf16.mxu0 0
          %421 = vmatpush1.bf16.msra.mxu0 0
          %422 = vmatprep.mubr.bf16.mxu0 0
          %423 = vmatmul.mubr.bf16.gmra.mrb[0].mxu0 %v329
          %v424 = vpop.f32.mrb[0].mxu0
          %v425 = vadd.f32 0.0, %v424
          %v426 = vpop.f32.mrb[0].mxu0
          %v427 = vpop.f32.mrb[0].mxu0
          %v428 = vpop.f32.mrb[0].mxu0
          %429 = vdwg.mxu0
          %v430 = vpack.c.bf16 %v425, %v425
          %431 = vst.msk [vmem:[#allocation4] sm:$0xf] %vm372, %v430
        $region52: #{multi_head_attention.1} parent=47 // pred_fallthru
          _
        %s432 = smul.u32 %s26, 8
        %s433 = sshra.s32 %s432, 3
        %s434 = sand.u32 %s432, 7
        %s435 = smul.addr %s433, 4
        %s436 = scalar_lea.vmem %s300, %s435
        %v437 = vld [vmem:[%s436] sm:$0xf]
        %v438 = vld [vmem:[%s1] sm:$0xf]
        %v439 = vld [vmem:[%s1 + $0x4] sm:$0xf]
        %v440 = vld [vmem:[%s1 + $0x8] sm:$0xf]
        %v441 = vld [vmem:[%s1 + $0xc] sm:$0xf]
        %v446 = vunpack.c.l.b16 %v438
        %v447 = vunpack.c.l.b16 %v439
        %v448 = vunpack.c.l.b16 %v440
        %v449 = vunpack.c.l.b16 %v441
        %v450 = vpack.c.b16 %v447, %v446
        %v451 = vpack.c.b16 %v449, %v448
        %vm454 = vcmask 261120
        %v456 = vsel %vm454, %v437, 0
        %458 = vmatprep.subr.bf16.mxu0 0
        %459 = vmatpush1.bf16.msra.mxu0 %v450
        %460 = vmatprep.subr.bf16.mxu0 0
        %461 = vmatpush1.bf16.msra.mxu0 %v451
        %462 = vmatprep.subr.bf16.mxu0 0
        %463 = vmatpush1.bf16.msra.mxu0 0
        %464 = vmatprep.subr.bf16.mxu0 0
        %465 = vmatpush1.bf16.msra.mxu0 0
        %466 = vmatprep.subr.bf16.mxu0 0
        %467 = vmatpush1.bf16.msra.mxu0 0
        %468 = vmatprep.subr.bf16.mxu0 0
        %469 = vmatpush1.bf16.msra.mxu0 0
        %470 = vmatprep.subr.bf16.mxu0 0
        %471 = vmatpush1.bf16.msra.mxu0 0
        %472 = vmatprep.subr.bf16.mxu0 0
        %473 = vmatpush1.bf16.msra.mxu0 0
        %474 = vmatprep.subr.bf16.mxu0 0
        %475 = vmatpush1.bf16.msra.mxu0 0
        %476 = vmatprep.subr.bf16.mxu0 0
        %477 = vmatpush1.bf16.msra.mxu0 0
        %478 = vmatprep.subr.bf16.mxu0 0
        %479 = vmatpush1.bf16.msra.mxu0 0
        %480 = vmatprep.subr.bf16.mxu0 0
        %481 = vmatpush1.bf16.msra.mxu0 0
        %482 = vmatprep.subr.bf16.mxu0 0
        %483 = vmatpush1.bf16.msra.mxu0 0
        %484 = vmatprep.subr.bf16.mxu0 0
        %485 = vmatpush1.bf16.msra.mxu0 0
        %486 = vmatprep.subr.bf16.mxu0 0
        %487 = vmatpush1.bf16.msra.mxu0 0
        %488 = vmatprep.subr.bf16.mxu0 0
        %489 = vmatpush1.bf16.msra.mxu0 0
        %490 = vmatprep.mubr.bf16.mxu0 0
        %491 = vmatmul.mubr.bf16.gmra.mrb[0].mxu0 %v456
        %v492 = vpop.f32.mrb[0].mxu0
        %v493 = vadd.f32 0.0, %v492
        %v494 = vpop.f32.mrb[0].mxu0
        %v495 = vpop.f32.mrb[0].mxu0
        %v496 = vpop.f32.mrb[0].mxu0
        %497 = vdwg.mxu0
        %v498 = vpack.c.bf16 %v493, %v493
        %vm499 = vcmask 257024
        %500 = vst.msk [vmem:[#allocation2] sm:$0xf] %vm499, %v498
        %v501 = vlaneseq
        %v502 = vshrl.u32 %v501, 7
        %v503 = vstv %s432
        %v504 = vadd.s32 %v502, %v503
        %v505 = vlaneseq
        %v506 = vand.u32 %v505, 127
        %vm507 = vcmp.gt.s32.totalorder %v506, %v504
        %v508 = vld [vmem:[#allocation2] sm:$0xf]
        %v509 = vld [vmem:[#allocation3] sm:$0xf]
        %v510 = vld [vmem:[#allocation4] sm:$0xf]
        %v511 = vld [vmem:[%s304] sm:$0xf]
        %v512 = vunpack.c.l.bf16 %v511
        %vm513 = vcmask 64512
        %v515 = vsel %vm513, %v508, 0
        %v518 = vsel %vm513, %v509, 0
        %520 = vmatprep.subr.bf16.mxu0 0
        %521 = vmatpush1.bf16.xpose.msra.mxu0 %v518
        %522 = vmatprep.subr.bf16.mxu0 0
        %523 = vmatpush1.bf16.xpose.msra.mxu0 0
        %524 = vmatprep.subr.bf16.mxu0 0
        %525 = vmatpush1.bf16.xpose.msra.mxu0 0
        %526 = vmatprep.subr.bf16.mxu0 0
        %527 = vmatpush1.bf16.xpose.msra.mxu0 0
        %528 = vmatprep.subr.bf16.mxu0 0
        %529 = vmatpush1.bf16.xpose.msra.mxu0 0
        %530 = vmatprep.subr.bf16.mxu0 0
        %531 = vmatpush1.bf16.xpose.msra.mxu0 0
        %532 = vmatprep.subr.bf16.mxu0 0
        %533 = vmatpush1.bf16.xpose.msra.mxu0 0
        %534 = vmatprep.subr.bf16.mxu0 0
        %535 = vmatpush1.bf16.xpose.msra.mxu0 0
        %536 = vmatprep.subr.bf16.mxu0 0
        %537 = vmatpush1.bf16.xpose.msra.mxu0 0
        %538 = vmatprep.subr.bf16.mxu0 0
        %539 = vmatpush1.bf16.xpose.msra.mxu0 0
        %540 = vmatprep.subr.bf16.mxu0 0
        %541 = vmatpush1.bf16.xpose.msra.mxu0 0
        %542 = vmatprep.subr.bf16.mxu0 0
        %543 = vmatpush1.bf16.xpose.msra.mxu0 0
        %544 = vmatprep.subr.bf16.mxu0 0
        %545 = vmatpush1.bf16.xpose.msra.mxu0 0
        %546 = vmatprep.subr.bf16.mxu0 0
        %547 = vmatpush1.bf16.xpose.msra.mxu0 0
        %548 = vmatprep.subr.bf16.mxu0 0
        %549 = vmatpush1.bf16.xpose.msra.mxu0 0
        %550 = vmatprep.subr.bf16.mxu0 0
        %551 = vmatpush1.bf16.xpose.msra.mxu0 0
        %552 = vmatprep.mubr.bf16.mxu0 0
        %553 = vmatmul.mubr.bf16.gmra.mrb[0].mxu0 %v515
        %v554 = vpop.f32.mrb[0].mxu0
        %v555 = vadd.f32 %v512, %v554
        %v556 = vpop.f32.mrb[0].mxu0
        %v557 = vpop.f32.mrb[0].mxu0
        %v558 = vpop.f32.mrb[0].mxu0
        %559 = vdwg.mxu0
        %v560 = vsel %vm507, -inf, %v555
        %v561 = vsel %vm513, %v560, -inf
        %562 = vmax.xlane.f32.xlu0 %v561
        %v563 = vpop.xlane.xlu0 %562
        %v564 = vsub.f32 %v560, %v563
        %v565 = vmul.f32 %v564, 1.442695
        %v566 = vpow.pop %v565
        %v567 = vsel %vm513, %v566, 0.0
        %568 = vadd.xlane.f32.xlu0 %v567
        %v569 = vpop.xlane.xlu0 %568
        %v570 = vrcp.pop %v569
        %v571 = vmul.f32 %v566, %v570
        %v572 = vpack.c.bf16 %v571, %v571
        %v574 = vsel %vm513, %v572, 0
        %vm576 = vcmask 1043456
        %v578 = vsel %vm576, %v510, 0
        %580 = vmatprep.subr.bf16.mxu0 0
        %581 = vmatpush1.bf16.msra.mxu0 %v578
        %582 = vmatprep.subr.bf16.mxu0 0
        %583 = vmatpush1.bf16.msra.mxu0 0
        %584 = vmatprep.subr.bf16.mxu0 0
        %585 = vmatpush1.bf16.msra.mxu0 0
        %586 = vmatprep.subr.bf16.mxu0 0
        %587 = vmatpush1.bf16.msra.mxu0 0
        %588 = vmatprep.subr.bf16.mxu0 0
        %589 = vmatpush1.bf16.msra.mxu0 0
        %590 = vmatprep.subr.bf16.mxu0 0
        %591 = vmatpush1.bf16.msra.mxu0 0
        %592 = vmatprep.subr.bf16.mxu0 0
        %593 = vmatpush1.bf16.msra.mxu0 0
        %594 = vmatprep.subr.bf16.mxu0 0
        %595 = vmatpush1.bf16.msra.mxu0 0
        %596 = vmatprep.subr.bf16.mxu0 0
        %597 = vmatpush1.bf16.msra.mxu0 0
        %598 = vmatprep.subr.bf16.mxu0 0
        %599 = vmatpush1.bf16.msra.mxu0 0
        %600 = vmatprep.subr.bf16.mxu0 0
        %601 = vmatpush1.bf16.msra.mxu0 0
        %602 = vmatprep.subr.bf16.mxu0 0
        %603 = vmatpush1.bf16.msra.mxu0 0
        %604 = vmatprep.subr.bf16.mxu0 0
        %605 = vmatpush1.bf16.msra.mxu0 0
        %606 = vmatprep.subr.bf16.mxu0 0
        %607 = vmatpush1.bf16.msra.mxu0 0
        %608 = vmatprep.subr.bf16.mxu0 0
        %609 = vmatpush1.bf16.msra.mxu0 0
        %610 = vmatprep.subr.bf16.mxu0 0
        %611 = vmatpush1.bf16.msra.mxu0 0
        %612 = vmatprep.mubr.bf16.mxu0 0
        %613 = vmatmul.mubr.bf16.gmra.mrb[0].mxu0 %v574
        %v614 = vpop.f32.mrb[0].mxu0
        %v615 = vadd.f32 0.0, %v614
        %v616 = vpop.f32.mrb[0].mxu0
        %v617 = vpop.f32.mrb[0].mxu0
        %v618 = vpop.f32.mrb[0].mxu0
        %619 = vdwg.mxu0
        %v620 = vpack.c.bf16 %v615, %v615
        %vm621 = vcmask 60416
        %622 = vst.msk [vmem:[#allocation5] sm:$0xf] %vm621, %v620
        %v623 = vld [vmem:[#allocation2] sm:$0xf]
        %v624 = vld [vmem:[#allocation3] sm:$0xf]
        %v625 = vld [vmem:[#allocation4] sm:$0xf]
        %s626 = scalar_lea.vmem %s304, 4
        %v627 = vld [vmem:[%s626] sm:$0xf]
        %v628 = vunpack.c.l.bf16 %v627
        %v630 = vunpack.c.l.b16 %v623
        %v631 = vpack.c.b16 %v630, %v630
        %632 = vrot.lane.b32.xlu0 %v631, 120
        %v633 = vpop.permute.xlu0 %632
        %v635 = vunpack.c.l.b16 %v624
        %v636 = vpack.c.b16 %v635, %v635
        %637 = vrot.lane.b32.xlu0 %v636, 120
        %v638 = vpop.permute.xlu0 %637
        %v640 = vsel %vm513, %v633, 0
        %v643 = vsel %vm513, %v638, 0
        %645 = vmatprep.subr.bf16.mxu0 0
        %646 = vmatpush1.bf16.xpose.msra.mxu0 %v643
        %647 = vmatprep.subr.bf16.mxu0 0
        %648 = vmatpush1.bf16.xpose.msra.mxu0 0
        %649 = vmatprep.subr.bf16.mxu0 0
        %650 = vmatpush1.bf16.xpose.msra.mxu0 0
        %651 = vmatprep.subr.bf16.mxu0 0
        %652 = vmatpush1.bf16.xpose.msra.mxu0 0
        %653 = vmatprep.subr.bf16.mxu0 0
        %654 = vmatpush1.bf16.xpose.msra.mxu0 0
        %655 = vmatprep.subr.bf16.mxu0 0
        %656 = vmatpush1.bf16.xpose.msra.mxu0 0
        %657 = vmatprep.subr.bf16.mxu0 0
        %658 = vmatpush1.bf16.xpose.msra.mxu0 0
        %659 = vmatprep.subr.bf16.mxu0 0
        %660 = vmatpush1.bf16.xpose.msra.mxu0 0
        %661 = vmatprep.subr.bf16.mxu0 0
        %662 = vmatpush1.bf16.xpose.msra.mxu0 0
        %663 = vmatprep.subr.bf16.mxu0 0
        %664 = vmatpush1.bf16.xpose.msra.mxu0 0
        %665 = vmatprep.subr.bf16.mxu0 0
        %666 = vmatpush1.bf16.xpose.msra.mxu0 0
        %667 = vmatprep.subr.bf16.mxu0 0
        %668 = vmatpush1.bf16.xpose.msra.mxu0 0
        %669 = vmatprep.subr.bf16.mxu0 0
        %670 = vmatpush1.bf16.xpose.msra.mxu0 0
        %671 = vmatprep.subr.bf16.mxu0 0
        %672 = vmatpush1.bf16.xpose.msra.mxu0 0
        %673 = vmatprep.subr.bf16.mxu0 0
        %674 = vmatpush1.bf16.xpose.msra.mxu0 0
        %675 = vmatprep.subr.bf16.mxu0 0
        %676 = vmatpush1.bf16.xpose.msra.mxu0 0
        %677 = vmatprep.mubr.bf16.mxu0 0
        %678 = vmatmul.mubr.bf16.gmra.mrb[0].mxu0 %v640
        %v679 = vpop.f32.mrb[0].mxu0
        %v680 = vadd.f32 %v628, %v679
        %v681 = vpop.f32.mrb[0].mxu0
        %v682 = vpop.f32.mrb[0].mxu0
        %v683 = vpop.f32.mrb[0].mxu0
        %684 = vdwg.mxu0
        %v685 = vsel %vm507, -inf, %v680
        %v686 = vsel %vm513, %v685, -inf
        %687 = vmax.xlane.f32.xlu0 %v686
        %v688 = vpop.xlane.xlu0 %687
        %v689 = vsub.f32 %v685, %v688
        %v690 = vmul.f32 %v689, 1.442695
        %v691 = vpow.pop %v690
        %v692 = vsel %vm513, %v691, 0.0
        %693 = vadd.xlane.f32.xlu0 %v692
        %v694 = vpop.xlane.xlu0 %693
        %v695 = vrcp.pop %v694
        %v696 = vmul.f32 %v691, %v695
        %v697 = vpack.c.bf16 %v696, %v696
        %v699 = vunpack.c.l.b16 %v625
        %v700 = vpack.c.b16 %v699, %v699
        %701 = vrot.lane.b32.xlu0 %v700, 120
        %v702 = vpop.permute.xlu0 %701
        %v704 = vsel %vm513, %v697, 0
        %v707 = vsel %vm576, %v702, 0
        %709 = vmatprep.subr.bf16.mxu0 0
        %710 = vmatpush1.bf16.msra.mxu0 %v707
        %711 = vmatprep.subr.bf16.mxu0 0
        %712 = vmatpush1.bf16.msra.mxu0 0
        %713 = vmatprep.subr.bf16.mxu0 0
        %714 = vmatpush1.bf16.msra.mxu0 0
        %715 = vmatprep.subr.bf16.mxu0 0
        %716 = vmatpush1.bf16.msra.mxu0 0
        %717 = vmatprep.subr.bf16.mxu0 0
        %718 = vmatpush1.bf16.msra.mxu0 0
        %719 = vmatprep.subr.bf16.mxu0 0
        %720 = vmatpush1.bf16.msra.mxu0 0
        %721 = vmatprep.subr.bf16.mxu0 0
        %722 = vmatpush1.bf16.msra.mxu0 0
        %723 = vmatprep.subr.bf16.mxu0 0
        %724 = vmatpush1.bf16.msra.mxu0 0
        %725 = vmatprep.subr.bf16.mxu0 0
        %726 = vmatpush1.bf16.msra.mxu0 0
        %727 = vmatprep.subr.bf16.mxu0 0
        %728 = vmatpush1.bf16.msra.mxu0 0
        %729 = vmatprep.subr.bf16.mxu0 0
        %730 = vmatpush1.bf16.msra.mxu0 0
        %731 = vmatprep.subr.bf16.mxu0 0
        %732 = vmatpush1.bf16.msra.mxu0 0
        %733 = vmatprep.subr.bf16.mxu0 0
        %734 = vmatpush1.bf16.msra.mxu0 0
        %735 = vmatprep.subr.bf16.mxu0 0
        %736 = vmatpush1.bf16.msra.mxu0 0
        %737 = vmatprep.subr.bf16.mxu0 0
        %738 = vmatpush1.bf16.msra.mxu0 0
        %739 = vmatprep.subr.bf16.mxu0 0
        %740 = vmatpush1.bf16.msra.mxu0 0
        %741 = vmatprep.mubr.bf16.mxu0 0
        %742 = vmatmul.mubr.bf16.gmra.mrb[0].mxu0 %v704
        %v743 = vpop.f32.mrb[0].mxu0
        %v744 = vadd.f32 0.0, %v743
        %v745 = vpop.f32.mrb[0].mxu0
        %v746 = vpop.f32.mrb[0].mxu0
        %v747 = vpop.f32.mrb[0].mxu0
        %748 = vdwg.mxu0
        %v749 = vpack.c.bf16 %v744, %v744
        %v751 = vunpack.c.l.b16 %v749
        %v752 = vpack.c.b16 %v751, %v751
        %753 = vrot.lane.b32.xlu0 %v752, 8
        %v754 = vpop.permute.xlu0 %753
        %vm756 = vcmask 126016
        %757 = vst.msk [vmem:[#allocation5] sm:$0xf] %vm756, %v754
        %v758 = vld [vmem:[#allocation2] sm:$0xf]
        %v759 = vld [vmem:[#allocation3] sm:$0xf]
        %v760 = vld [vmem:[#allocation4] sm:$0xf]
        %s761 = scalar_lea.vmem %s304, 8
        %v762 = vld [vmem:[%s761] sm:$0xf]
        %v763 = vunpack.c.l.bf16 %v762
        %v765 = vunpack.c.l.b16 %v758
        %v766 = vpack.c.b16 %v765, %v765
        %767 = vrot.lane.b32.xlu0 %v766, 112
        %v768 = vpop.permute.xlu0 %767
        %v770 = vunpack.c.l.b16 %v759
        %v771 = vpack.c.b16 %v770, %v770
        %772 = vrot.lane.b32.xlu0 %v771, 112
        %v773 = vpop.permute.xlu0 %772
        %v775 = vsel %vm513, %v768, 0
        %v778 = vsel %vm513, %v773, 0
        %780 = vmatprep.subr.bf16.mxu0 0
        %781 = vmatpush1.bf16.xpose.msra.mxu0 %v778
        %782 = vmatprep.subr.bf16.mxu0 0
        %783 = vmatpush1.bf16.xpose.msra.mxu0 0
        %784 = vmatprep.subr.bf16.mxu0 0
        %785 = vmatpush1.bf16.xpose.msra.mxu0 0
        %786 = vmatprep.subr.bf16.mxu0 0
        %787 = vmatpush1.bf16.xpose.msra.mxu0 0
        %788 = vmatprep.subr.bf16.mxu0 0
        %789 = vmatpush1.bf16.xpose.msra.mxu0 0
        %790 = vmatprep.subr.bf16.mxu0 0
        %791 = vmatpush1.bf16.xpose.msra.mxu0 0
        %792 = vmatprep.subr.bf16.mxu0 0
        %793 = vmatpush1.bf16.xpose.msra.mxu0 0
        %794 = vmatprep.subr.bf16.mxu0 0
        %795 = vmatpush1.bf16.xpose.msra.mxu0 0
        %796 = vmatprep.subr.bf16.mxu0 0
        %797 = vmatpush1.bf16.xpose.msra.mxu0 0
        %798 = vmatprep.subr.bf16.mxu0 0
        %799 = vmatpush1.bf16.xpose.msra.mxu0 0
        %800 = vmatprep.subr.bf16.mxu0 0
        %801 = vmatpush1.bf16.xpose.msra.mxu0 0
        %802 = vmatprep.subr.bf16.mxu0 0
        %803 = vmatpush1.bf16.xpose.msra.mxu0 0
        %804 = vmatprep.subr.bf16.mxu0 0
        %805 = vmatpush1.bf16.xpose.msra.mxu0 0
        %806 = vmatprep.subr.bf16.mxu0 0
        %807 = vmatpush1.bf16.xpose.msra.mxu0 0
        %808 = vmatprep.subr.bf16.mxu0 0
        %809 = vmatpush1.bf16.xpose.msra.mxu0 0
        %810 = vmatprep.subr.bf16.mxu0 0
        %811 = vmatpush1.bf16.xpose.msra.mxu0 0
        %812 = vmatprep.mubr.bf16.mxu0 0
        %813 = vmatmul.mubr.bf16.gmra.mrb[0].mxu0 %v775
        %v814 = vpop.f32.mrb[0].mxu0
        %v815 = vadd.f32 %v763, %v814
        %v816 = vpop.f32.mrb[0].mxu0
        %v817 = vpop.f32.mrb[0].mxu0
        %v818 = vpop.f32.mrb[0].mxu0
        %819 = vdwg.mxu0
        %v820 = vsel %vm507, -inf, %v815
        %v821 = vsel %vm513, %v820, -inf
        %822 = vmax.xlane.f32.xlu0 %v821
        %v823 = vpop.xlane.xlu0 %822
        %v824 = vsub.f32 %v820, %v823
        %v825 = vmul.f32 %v824, 1.442695
        %v826 = vpow.pop %v825
        %v827 = vsel %vm513, %v826, 0.0
        %828 = vadd.xlane.f32.xlu0 %v827
        %v829 = vpop.xlane.xlu0 %828
        %v830 = vrcp.pop %v829
        %v831 = vmul.f32 %v826, %v830
        %v832 = vpack.c.bf16 %v831, %v831
        %v834 = vunpack.c.l.b16 %v760
        %v835 = vpack.c.b16 %v834, %v834
        %836 = vrot.lane.b32.xlu0 %v835, 112
        %v837 = vpop.permute.xlu0 %836
        %v839 = vsel %vm513, %v832, 0
        %v842 = vsel %vm576, %v837, 0
        %844 = vmatprep.subr.bf16.mxu0 0
        %845 = vmatpush1.bf16.msra.mxu0 %v842
        %846 = vmatprep.subr.bf16.mxu0 0
        %847 = vmatpush1.bf16.msra.mxu0 0
        %848 = vmatprep.subr.bf16.mxu0 0
        %849 = vmatpush1.bf16.msra.mxu0 0
        %850 = vmatprep.subr.bf16.mxu0 0
        %851 = vmatpush1.bf16.msra.mxu0 0
        %852 = vmatprep.subr.bf16.mxu0 0
        %853 = vmatpush1.bf16.msra.mxu0 0
        %854 = vmatprep.subr.bf16.mxu0 0
        %855 = vmatpush1.bf16.msra.mxu0 0
        %856 = vmatprep.subr.bf16.mxu0 0
        %857 = vmatpush1.bf16.msra.mxu0 0
        %858 = vmatprep.subr.bf16.mxu0 0
        %859 = vmatpush1.bf16.msra.mxu0 0
        %860 = vmatprep.subr.bf16.mxu0 0
        %861 = vmatpush1.bf16.msra.mxu0 0
        %862 = vmatprep.subr.bf16.mxu0 0
        %863 = vmatpush1.bf16.msra.mxu0 0
        %864 = vmatprep.subr.bf16.mxu0 0
        %865 = vmatpush1.bf16.msra.mxu0 0
        %866 = vmatprep.subr.bf16.mxu0 0
        %867 = vmatpush1.bf16.msra.mxu0 0
        %868 = vmatprep.subr.bf16.mxu0 0
        %869 = vmatpush1.bf16.msra.mxu0 0
        %870 = vmatprep.subr.bf16.mxu0 0
        %871 = vmatpush1.bf16.msra.mxu0 0
        %872 = vmatprep.subr.bf16.mxu0 0
        %873 = vmatpush1.bf16.msra.mxu0 0
        %874 = vmatprep.subr.bf16.mxu0 0
        %875 = vmatpush1.bf16.msra.mxu0 0
        %876 = vmatprep.mubr.bf16.mxu0 0
        %877 = vmatmul.mubr.bf16.gmra.mrb[0].mxu0 %v839
        %v878 = vpop.f32.mrb[0].mxu0
        %v879 = vadd.f32 0.0, %v878
        %v880 = vpop.f32.mrb[0].mxu0
        %v881 = vpop.f32.mrb[0].mxu0
        %v882 = vpop.f32.mrb[0].mxu0
        %883 = vdwg.mxu0
        %v884 = vpack.c.bf16 %v879, %v879
        %v886 = vunpack.c.l.b16 %v884
        %v887 = vpack.c.b16 %v886, %v886
        %888 = vrot.lane.b32.xlu0 %v887, 16
        %v889 = vpop.permute.xlu0 %888
        %vm891 = vcmask 191616
        %892 = vst.msk [vmem:[#allocation5] sm:$0xf] %vm891, %v889
        %v893 = vld [vmem:[#allocation2] sm:$0xf]
        %v894 = vld [vmem:[#allocation3] sm:$0xf]
        %v895 = vld [vmem:[#allocation4] sm:$0xf]
        %s896 = scalar_lea.vmem %s304, 12
        %v897 = vld [vmem:[%s896] sm:$0xf]
        %v898 = vunpack.c.l.bf16 %v897
        %v900 = vunpack.c.l.b16 %v893
        %v901 = vpack.c.b16 %v900, %v900
        %902 = vrot.lane.b32.xlu0 %v901, 104
        %v903 = vpop.permute.xlu0 %902
        %v905 = vunpack.c.l.b16 %v894
        %v906 = vpack.c.b16 %v905, %v905
        %907 = vrot.lane.b32.xlu0 %v906, 104
        %v908 = vpop.permute.xlu0 %907
        %v910 = vsel %vm513, %v903, 0
        %v913 = vsel %vm513, %v908, 0
        %915 = vmatprep.subr.bf16.mxu0 0
        %916 = vmatpush1.bf16.xpose.msra.mxu0 %v913
        %917 = vmatprep.subr.bf16.mxu0 0
        %918 = vmatpush1.bf16.xpose.msra.mxu0 0
        %919 = vmatprep.subr.bf16.mxu0 0
        %920 = vmatpush1.bf16.xpose.msra.mxu0 0
        %921 = vmatprep.subr.bf16.mxu0 0
        %922 = vmatpush1.bf16.xpose.msra.mxu0 0
        %923 = vmatprep.subr.bf16.mxu0 0
        %924 = vmatpush1.bf16.xpose.msra.mxu0 0
        %925 = vmatprep.subr.bf16.mxu0 0
        %926 = vmatpush1.bf16.xpose.msra.mxu0 0
        %927 = vmatprep.subr.bf16.mxu0 0
        %928 = vmatpush1.bf16.xpose.msra.mxu0 0
        %929 = vmatprep.subr.bf16.mxu0 0
        %930 = vmatpush1.bf16.xpose.msra.mxu0 0
        %931 = vmatprep.subr.bf16.mxu0 0
        %932 = vmatpush1.bf16.xpose.msra.mxu0 0
        %933 = vmatprep.subr.bf16.mxu0 0
        %934 = vmatpush1.bf16.xpose.msra.mxu0 0
        %935 = vmatprep.subr.bf16.mxu0 0
        %936 = vmatpush1.bf16.xpose.msra.mxu0 0
        %937 = vmatprep.subr.bf16.mxu0 0
        %938 = vmatpush1.bf16.xpose.msra.mxu0 0
        %939 = vmatprep.subr.bf16.mxu0 0
        %940 = vmatpush1.bf16.xpose.msra.mxu0 0
        %941 = vmatprep.subr.bf16.mxu0 0
        %942 = vmatpush1.bf16.xpose.msra.mxu0 0
        %943 = vmatprep.subr.bf16.mxu0 0
        %944 = vmatpush1.bf16.xpose.msra.mxu0 0
        %945 = vmatprep.subr.bf16.mxu0 0
        %946 = vmatpush1.bf16.xpose.msra.mxu0 0
        %947 = vmatprep.mubr.bf16.mxu0 0
        %948 = vmatmul.mubr.bf16.gmra.mrb[0].mxu0 %v910
        %v949 = vpop.f32.mrb[0].mxu0
        %v950 = vadd.f32 %v898, %v949
        %v951 = vpop.f32.mrb[0].mxu0
        %v952 = vpop.f32.mrb[0].mxu0
        %v953 = vpop.f32.mrb[0].mxu0
        %954 = vdwg.mxu0
        %v955 = vsel %vm507, -inf, %v950
        %v956 = vsel %vm513, %v955, -inf
        %957 = vmax.xlane.f32.xlu0 %v956
        %v958 = vpop.xlane.xlu0 %957
        %v959 = vsub.f32 %v955, %v958
        %v960 = vmul.f32 %v959, 1.442695
        %v961 = vpow.pop %v960
        %v962 = vsel %vm513, %v961, 0.0
        %963 = vadd.xlane.f32.xlu0 %v962
        %v964 = vpop.xlane.xlu0 %963
        %v965 = vrcp.pop %v964
        %v966 = vmul.f32 %v961, %v965
        %v967 = vpack.c.bf16 %v966, %v966
        %v969 = vunpack.c.l.b16 %v895
        %v970 = vpack.c.b16 %v969, %v969
        %971 = vrot.lane.b32.xlu0 %v970, 104
        %v972 = vpop.permute.xlu0 %971
        %v974 = vsel %vm513, %v967, 0
        %v977 = vsel %vm576, %v972, 0
        %979 = vmatprep.subr.bf16.mxu0 0
        %980 = vmatpush1.bf16.msra.mxu0 %v977
        %981 = vmatprep.subr.bf16.mxu0 0
        %982 = vmatpush1.bf16.msra.mxu0 0
        %983 = vmatprep.subr.bf16.mxu0 0
        %984 = vmatpush1.bf16.msra.mxu0 0
        %985 = vmatprep.subr.bf16.mxu0 0
        %986 = vmatpush1.bf16.msra.mxu0 0
        %987 = vmatprep.subr.bf16.mxu0 0
        %988 = vmatpush1.bf16.msra.mxu0 0
        %989 = vmatprep.subr.bf16.mxu0 0
        %990 = vmatpush1.bf16.msra.mxu0 0
        %991 = vmatprep.subr.bf16.mxu0 0
        %992 = vmatpush1.bf16.msra.mxu0 0
        %993 = vmatprep.subr.bf16.mxu0 0
        %994 = vmatpush1.bf16.msra.mxu0 0
        %995 = vmatprep.subr.bf16.mxu0 0
        %996 = vmatpush1.bf16.msra.mxu0 0
        %997 = vmatprep.subr.bf16.mxu0 0
        %998 = vmatpush1.bf16.msra.mxu0 0
        %999 = vmatprep.subr.bf16.mxu0 0
        %1000 = vmatpush1.bf16.msra.mxu0 0
        %1001 = vmatprep.subr.bf16.mxu0 0
        %1002 = vmatpush1.bf16.msra.mxu0 0
        %1003 = vmatprep.subr.bf16.mxu0 0
        %1004 = vmatpush1.bf16.msra.mxu0 0
        %1005 = vmatprep.subr.bf16.mxu0 0
        %1006 = vmatpush1.bf16.msra.mxu0 0
        %1007 = vmatprep.subr.bf16.mxu0 0
        %1008 = vmatpush1.bf16.msra.mxu0 0
        %1009 = vmatprep.subr.bf16.mxu0 0
        %1010 = vmatpush1.bf16.msra.mxu0 0
        %1011 = vmatprep.mubr.bf16.mxu0 0
        %1012 = vmatmul.mubr.bf16.gmra.mrb[0].mxu0 %v974
        %v1013 = vpop.f32.mrb[0].mxu0
        %v1014 = vadd.f32 0.0, %v1013
        %v1015 = vpop.f32.mrb[0].mxu0
        %v1016 = vpop.f32.mrb[0].mxu0
        %v1017 = vpop.f32.mrb[0].mxu0
        %1018 = vdwg.mxu0
        %v1019 = vpack.c.bf16 %v1014, %v1014
        %v1021 = vunpack.c.l.b16 %v1019
        %v1022 = vpack.c.b16 %v1021, %v1021
        %1023 = vrot.lane.b32.xlu0 %v1022, 24
        %v1024 = vpop.permute.xlu0 %1023
        %vm1026 = vcmask 257216
        %1027 = vst.msk [vmem:[#allocation5] sm:$0xf] %vm1026, %v1024
        %v1028 = vld [vmem:[#allocation5] sm:$0xf]
        %v1029 = vld [vmem:[%s5] sm:$0xf]
        %v1030 = vld [vmem:[%s5 + $0x4] sm:$0xf]
        %v1031 = vld [vmem:[%s5 + $0x8] sm:$0xf]
        %v1032 = vld [vmem:[%s5 + $0xc] sm:$0xf]
        %v1033 = vld [vmem:[%s6] sm:$0x1]
        %v1035 = vlaneseq
        %v1036 = vshrl.u32 %v1035, 7
        %v1037 = vsub.s32 0, %v1036
        %v1038 = vrot.slane %v1033, %v1037
        %v1044 = vunpack.c.l.b16 %v1029
        %v1045 = vunpack.c.l.b16 %v1030
        %v1046 = vunpack.c.l.b16 %v1031
        %v1047 = vunpack.c.l.b16 %v1032
        %v1048 = vpack.c.b16 %v1045, %v1044
        %v1049 = vpack.c.b16 %v1047, %v1046
        %v1053 = vsel %vm454, %v1028, 0
        %1055 = vmatprep.subr.bf16.mxu0 0
        %1056 = vmatpush1.bf16.msra.mxu0 %v1048
        %1057 = vmatprep.subr.bf16.mxu0 0
        %1058 = vmatpush1.bf16.msra.mxu0 %v1049
        %1059 = vmatprep.subr.bf16.mxu0 0
        %1060 = vmatpush1.bf16.msra.mxu0 0
        %1061 = vmatprep.subr.bf16.mxu0 0
        %1062 = vmatpush1.bf16.msra.mxu0 0
        %1063 = vmatprep.subr.bf16.mxu0 0
        %1064 = vmatpush1.bf16.msra.mxu0 0
        %1065 = vmatprep.subr.bf16.mxu0 0
        %1066 = vmatpush1.bf16.msra.mxu0 0
        %1067 = vmatprep.subr.bf16.mxu0 0
        %1068 = vmatpush1.bf16.msra.mxu0 0
        %1069 = vmatprep.subr.bf16.mxu0 0
        %1070 = vmatpush1.bf16.msra.mxu0 0
        %1071 = vmatprep.subr.bf16.mxu0 0
        %1072 = vmatpush1.bf16.msra.mxu0 0
        %1073 = vmatprep.subr.bf16.mxu0 0
        %1074 = vmatpush1.bf16.msra.mxu0 0
        %1075 = vmatprep.subr.bf16.mxu0 0
        %1076 = vmatpush1.bf16.msra.mxu0 0
        %1077 = vmatprep.subr.bf16.mxu0 0
        %1078 = vmatpush1.bf16.msra.mxu0 0
        %1079 = vmatprep.subr.bf16.mxu0 0
        %1080 = vmatpush1.bf16.msra.mxu0 0
        %1081 = vmatprep.subr.bf16.mxu0 0
        %1082 = vmatpush1.bf16.msra.mxu0 0
        %1083 = vmatprep.subr.bf16.mxu0 0
        %1084 = vmatpush1.bf16.msra.mxu0 0
        %1085 = vmatprep.subr.bf16.mxu0 0
        %1086 = vmatpush1.bf16.msra.mxu0 0
        %1087 = vmatprep.mubr.bf16.mxu0 0
        %1088 = vmatmul.mubr.bf16.gmra.mrb[0].mxu0 %v1053
        %v1089 = vpop.f32.mrb[0].mxu0
        %v1090 = vadd.f32 %v1038, %v1089
        %v1091 = vpop.f32.mrb[0].mxu0
        %v1092 = vpop.f32.mrb[0].mxu0
        %v1093 = vpop.f32.mrb[0].mxu0
        %1094 = vdwg.mxu0
        %1095 = vst.msk [vmem:[%s296] sm:$0xff] %vm454, %v1090
        %s1096 = sand.u32 %s200, 1
        %s1097 = scalar_lea.sflag [#allocation7], %s1096
        %s1098 = sand.u32 %s200, 1
        %s1099 = smul.addr %s1098, 8
        %s1100 = scalar_lea.vmem [#allocation6], %s1099
        // Predicated region
        $region53: #{multi_head_attention.1} parent=47 // pred_check
          %p1101 = pneg %p210
        $region54: #{multi_head_attention.1} parent=47 // pred_check_branch
          %1103 = sbr.rel (%p1101) target = $region56
        $region55: #{multi_head_attention.1} parent=47 // pred_region
          %s1105 = ssub.s32 128, 128
          %1106 = vsyncadd %s1097, %s1105
          %s1107 = sadd.s32 %s26, %s25
          %s1108 = smul.addr %s1107, 128
          %s1109 = scalar_lea.hbm %s7, %s1108
          %s1111 = sshll.u32 %s1100, 4
          %s1112 = int_to_ptr.vmem [resolvable:$true] %s1111
          %1114 = dma.vmem_to_hbm [thread:$0]  %s1112, 128, %s1109, %s1097
        $region56: #{multi_head_attention.1} parent=47 // pred_fallthru
          _
      $region48: #{multi_head_attention.1} parent=5 // pred_fallthru
        _
      %p1115 = scmp.le.s32.totalorder 2, %s16
      // Predicated region
      $region57: #{multi_head_attention.1} parent=5 // pred_check
        %p1116 = pneg %p1115
      $region58: #{multi_head_attention.1} parent=5 // pred_check_branch
        %1118 = sbr.rel (%p1116) target = $region60
      $region59: #{multi_head_attention.1} parent=5 // pred_region
        %s1119 = ssub.s32 %s16, 2
        // Predicated region
        $region61: #{multi_head_attention.1} parent=59 // pred_check
          %p1120 = pneg %p216
        $region62: #{multi_head_attention.1} parent=59 // pred_check_branch
          %1122 = sbr.rel (%p1120) target = $region64
        $region63: #{multi_head_attention.1} parent=59 // pred_region
          %s1123 = sand.u32 %s201, 1
          %s1124 = scalar_lea.sflag [#allocation7], %s1123
          %s1125 = sand.u32 %s201, 1
          %s1126 = smul.addr %s1125, 8
          %s1127 = scalar_lea.vmem [#allocation6], %s1126
          %1128 = dma.done %s1124, 128
        $region64: #{multi_head_attention.1} parent=59 // pred_fallthru
          _
      $region60: #{multi_head_attention.1} parent=5 // pred_fallthru
        _
    $region6: #{multi_head_attention.1} parent=1 // loop_footer
      %s20 = sadd.s32 1, %s16
    $region7: #{multi_head_attention.1} parent=1 // loop_footer_branch
      %15 = sbr.rel target = $region3
    $region8: #{multi_head_attention.1} parent=1 // loop_exit
      _
    %1129 = vsyncpa [#allocation7], 1
    %s1130 = scalar_lea.sflag [#allocation7], 1
    %1131 = vsyncpa %s1130, 1

</llo_original>
